<compile_context>
chip_gen: v7x
topology: tpu7x:2x2x1
jax: 0.10.0
libtpu: 0.0.40
codegen_flags: <defaults>
</compile_context>

<pallas_src>
import math
from functools import partial

import jax
import jax.numpy as jnp
from jax.experimental import pallas as pl
from jax.experimental.pallas import tpu as pltpu


def _round_up(v, m):
    return ((v + m - 1) // m) * m


def _vmem_capacity_bytes():
    """Generation-aware VMEM capacity (v5e/v6e: 128 MiB, v7x: 64 MiB per TensorCore)."""
    try:
        info = pltpu.get_tpu_info()
        cap = getattr(info, "vmem_capacity_bytes", None)
        if cap:
            return int(cap)
    except Exception:
        pass
    return 64 * 1024 * 1024   # conservative fallback (v7x per-TC VMEM)


# ----------------------------------------------------------------------------- kernel
def _jknet_fused_kernel(x_ref, adj_ref, wh_ref, wr_ref, b_ref, o_ref,
                        agg_ref, sup_ref, *adj_scratch,
                        nlayers, in_pad, out_pad, tm, adj_resident):
    l = pl.program_id(0)   # layer index: 0..nlayers-1 hidden, nlayers = JK reduce layer
    i = pl.program_id(1)   # adjacency row-tile index

    if adj_resident:
        adj_vmem, adj_sem = adj_scratch

    # ---- one-time init (first grid step) ----------------------------------------
    @pl.when((l == 0) & (i == 0))
    def _init():
        if adj_resident:
            # Kick off the single full-adjacency HBM->VMEM DMA; it overlaps with the
            # aggregate init and the layer-0 support matmul below.
            pltpu.make_async_copy(adj_ref, adj_vmem, adj_sem.at[0]).start()
        # Keep padded rows/cols of the aggregate at exact zero (cheap insurance; all
        # live column slices are fully overwritten before they are read).
        agg_ref[...] = jnp.zeros_like(agg_ref)
        agg_ref[:, 0:in_pad] = x_ref[...]            # x occupies the first concat slice

    # ---- per-layer support = (input slice of agg) @ W_l  (once per layer, i==0) --
    # Sliced matmuls: hidden layers contract only K=in_pad / K=out_pad rows; only the
    # JK reduce layer contracts the full aggregate width.
    @pl.when(i == 0)
    def _support():
        @pl.when(l == 0)
        def _l0():
            sup = jnp.dot(agg_ref[:, 0:in_pad], wh_ref[0:in_pad, :],
                          preferred_element_type=jnp.float32)
            sup_ref[...] = sup.astype(sup_ref.dtype)

        for lyr in range(1, nlayers):
            @pl.when(l == lyr)
            def _lh(lyr=lyr):
                c0 = in_pad + (lyr - 1) * out_pad       # previous hidden layer's slice
                sup = jnp.dot(agg_ref[:, c0:c0 + out_pad], wh_ref[0:out_pad, :],
                              preferred_element_type=jnp.float32)
                sup_ref[...] = sup.astype(sup_ref.dtype)

        @pl.when(l == nlayers)
        def _lr():
            sup = jnp.dot(agg_ref[...], wr_ref[...],
                          preferred_element_type=jnp.float32)
            sup_ref[...] = sup.astype(sup_ref.dtype)

    if adj_resident:
        @pl.when((l == 0) & (i == 0))
        def _wait_adj():
            pltpu.make_async_copy(adj_ref, adj_vmem, adj_sem.at[0]).wait()

    # ---- adjacency contraction for this row tile + bias + ReLU -------------------
    row0 = pl.multiple_of(i * tm, tm)
    if adj_resident:
        adj_tile = adj_vmem[pl.ds(row0, tm), :]
    else:
        adj_tile = adj_ref[...]

    acc = jnp.dot(adj_tile, sup_ref[...], preferred_element_type=jnp.float32)
    tile = jnp.maximum(acc + b_ref[...], 0.0)

    # Hidden layers: write the activations into the layer's concat slice.  Static
    # unrolled offsets keep every store lane-dense / unmasked and 128-aligned (a
    # dynamic lane offset would only be a marginal code-size win).
    for lyr in range(nlayers):
        @pl.when(l == lyr)
        def _store_hidden(lyr=lyr):
            col0 = in_pad + lyr * out_pad
            agg_ref[pl.ds(row0, tm), pl.ds(col0, out_pad)] = tile.astype(agg_ref.dtype)

    # Output row tile is overwritten by every layer; the last (reduce) layer's write
    # wins.  Redundant writebacks are tiny next to the adjacency stream.
    o_ref[...] = tile.astype(o_ref.dtype)


# --------------------------------------------------------------------------- wrapper
def _pack_params(params, in_c, out_c, in_pad, out_pad, agg_pad, kh_pad, nlayers):
    """Pad per-layer weights into compact slabs + a scattered reduce weight."""
    # hidden weights, one (kh_pad, out_pad) slab per layer (+1 unused zero slab so the
    # BlockSpec index map stays in range on the reduce-layer grid steps)
    wh = jnp.zeros((nlayers + 1, kh_pad, out_pad), jnp.float32)
    wh = wh.at[0, 0:in_c, 0:out_c].set(params[0][0])
    for l in range(1, nlayers):
        wh = wh.at[l, 0:out_c, 0:out_c].set(params[l][0])

    # reduce weight, scattered to the lane-padded concat layout of the aggregate
    wr = jnp.zeros((agg_pad, out_pad), jnp.float32)
    w_red = params[-1][0]
    wr = wr.at[0:in_c, 0:out_c].set(w_red[0:in_c])
    for l in range(nlayers):
        r0 = in_pad + l * out_pad
        s0 = in_c + l * out_c
        wr = wr.at[r0:r0 + out_c, 0:out_c].set(w_red[s0:s0 + out_c])

    b = jnp.zeros((nlayers + 1, 1, out_pad), jnp.float32)
    for l in range(nlayers + 1):
        b = b.at[l, 0, 0:out_c].set(params[l][1])

    return wh.astype(jnp.bfloat16), wr.astype(jnp.bfloat16), b


def dense_jknet_block_forward(x, adj, params, aggrmethod="concat",
                              force_streaming=False, max_tm=512):
    """Forward pass of DenseJKNetBlock (inference mode: dropout == identity)."""
    if aggrmethod != "concat":
        raise NotImplementedError("only aggrmethod='concat' (module default) is fused")

    N, in_c = x.shape
    out_c = params[0][0].shape[1]
    nlayers = len(params) - 1
    assert nlayers >= 1
    max_tm = max(int(max_tm), 128)

    in_pad = _round_up(in_c, 128)
    out_pad = _round_up(out_c, 128)
    kh_pad = max(in_pad, out_pad)
    agg_pad = in_pad + nlayers * out_pad

    # ------------------- generation-aware VMEM budgets -------------------
    cap = _vmem_capacity_bytes()
    vmem_limit_cap = min(int(0.80 * cap), cap - (8 << 20))   # leave compiler headroom
    ws_guard = int(0.65 * cap)                               # working-set hard guard
    adj_resident_budget = int(0.35 * cap)                    # ~22 MiB v7x, ~45 MiB v5e/v6e
    adj_stream_budget = int(0.30 * cap)                      # double-buffered adj tiles

    def working_set(n_pad_, tm_, resident_):
        ws = (n_pad_ * agg_pad * 2                 # JK aggregate scratch (bf16)
              + n_pad_ * out_pad * 2               # per-layer support scratch (bf16)
              + 2 * n_pad_ * in_pad * 2            # resident x block (double-buffered)
              + 2 * kh_pad * out_pad * 2           # hidden-weight block
              + 2 * agg_pad * out_pad * 2          # resident reduce weight
              + 2 * 8 * out_pad * 4                # bias block (sublane padded)
              + 2 * tm_ * out_pad * 4)             # output row tile (f32)
        if resident_:
            ws += n_pad_ * n_pad_ * 2              # adj resident in a single VMEM scratch
        else:
            ws += 2 * tm_ * n_pad_ * 2             # adj row tiles (double-buffered)
        return ws

    # ------------------- choose adjacency mode + row-tile size -------------------
    n_pad = _round_up(N, 128)
    adj_resident = (not force_streaming) and (n_pad * n_pad * 2 <= adj_resident_budget)

    if adj_resident:
        tm = max(c for c in (512, 256, 128) if n_pad % c == 0 and c <= max_tm)
        if working_set(n_pad, tm, True) > ws_guard:
            adj_resident = False                   # fall back to streamed row tiles

    if not adj_resident:
        # Pad the node count so that large row tiles divide it: 128-row tiles only reach
        # ~29% of HBM roofline vs ~85% at 512 on this memory-bound stream.
        if n_pad % 512 != 0:
            n_pad = _round_up(N, 512)
        cands = [c for c in (1024, 512, 256, 128)
                 if n_pad % c == 0 and c <= max_tm and 2 * c * n_pad * 2 <= adj_stream_budget]
        tm = max(cands) if cands else 128
        if working_set(n_pad, tm, False) > ws_guard:
            # TODO(synk): k-blocked (HBM-tiled) adjacency contraction for very large graphs.
            raise NotImplementedError("graph too large for the VMEM-resident fused kernel")

    ws = working_set(n_pad, tm, adj_resident)
    vmem_limit = int(min(vmem_limit_cap, max(32 << 20, int(1.25 * ws) + (4 << 20))))

    # ------------------- pad inputs / pack parameters -------------------
    x_pad = jnp.zeros((n_pad, in_pad), jnp.float32).at[:N, :in_c].set(x).astype(jnp.bfloat16)
    adj_pad = jnp.zeros((n_pad, n_pad), jnp.float32).at[:N, :N].set(adj).astype(jnp.bfloat16)
    wh, wr, b_all = _pack_params(params, in_c, out_c, in_pad, out_pad, agg_pad, kh_pad, nlayers)

    if adj_resident:
        adj_spec = pl.BlockSpec(memory_space=pl.ANY)     # raw HBM ref; one manual DMA
        extra_scratch = [pltpu.VMEM((n_pad, n_pad), jnp.bfloat16),
                         pltpu.SemaphoreType.DMA((1,))]
    else:
        adj_spec = pl.BlockSpec((tm, n_pad), lambda l, i: (i, 0))   # streamed row tiles
        extra_scratch = []

    grid = (nlayers + 1, n_pad // tm)

    # Advisory cost estimate for XLA's scheduler.
    sup_flops = 2 * n_pad * out_pad * (in_pad + max(nlayers - 1, 0) * out_pad + agg_pad)
    adj_flops = 2 * (nlayers + 1) * n_pad * n_pad * out_pad
    adj_bytes = n_pad * n_pad * 2 * (1 if adj_resident else (nlayers + 1))
    bytes_accessed = (adj_bytes + n_pad * in_pad * 2 + wh.size * 2 + wr.size * 2
                      + b_all.size * 4 + (nlayers + 1) * n_pad * out_pad * 4)

    kernel = partial(_jknet_fused_kernel, nlayers=nlayers, in_pad=in_pad,
                     out_pad=out_pad, tm=tm, adj_resident=adj_resident)

    out_full = pl.pallas_call(
        kernel,
        out_shape=jax.ShapeDtypeStruct((n_pad, out_pad), jnp.float32),
        grid_spec=pltpu.PrefetchScalarGridSpec(
            num_scalar_prefetch=0,
            grid=grid,
            in_specs=[
                pl.BlockSpec((n_pad, in_pad), lambda l, i: (0, 0)),              # x (read once)
                adj_spec,                                                        # adjacency
                pl.BlockSpec((None, kh_pad, out_pad), lambda l, i: (l, 0, 0)),   # hidden W_l
                pl.BlockSpec((agg_pad, out_pad), lambda l, i: (0, 0)),           # reduce W
                pl.BlockSpec((None, 1, out_pad), lambda l, i: (l, 0, 0)),        # b_l
            ],
            out_specs=pl.BlockSpec((tm, out_pad), lambda l, i: (i, 0)),          # tiled output
            scratch_shapes=[pltpu.VMEM((n_pad, agg_pad), jnp.bfloat16),  # JK aggregate (concat)
                            pltpu.VMEM((n_pad, out_pad), jnp.bfloat16)]  # per-layer support
                           + extra_scratch,
        ),
        compiler_params=pltpu.CompilerParams(
            # Both axes carry a sequential dependency through the VMEM aggregate
            # (layer l+1 reads every row tile written by layer l) -> "arbitrary".
            dimension_semantics=("arbitrary", "arbitrary"),
            vmem_limit_bytes=vmem_limit,
        ),
        cost_estimate=pl.CostEstimate(flops=sup_flops + adj_flops, transcendentals=0,
                                      bytes_accessed=bytes_accessed),
    )(x_pad, adj_pad, wh, wr, b_all)

    return out_full[:N, :out_c]


# ------------------------------------------------------------------------ params/ref
def init_dense_jknet_params(key, in_channels, out_channels, nlayers):
    """Deterministic init matching GraphConvolutionBS.reset_parameters:
    W ~ U(-stdv, stdv), b ~ U(-stdv, stdv), stdv = 1/sqrt(out_features)."""
    dims = []
    for i in range(nlayers):
        fin = in_channels if i == 0 else out_channels
        dims.append((fin, out_channels))
    reduce_channels = in_channels + out_channels * nlayers
    dims.append((reduce_channels, out_channels))  # final "reduce" layer

    params = []
    for (fin, fout) in dims:
        key, kw, kb = jax.random.split(key, 3)
        stdv = 1.0 / math.sqrt(fout)
        w = jax.random.uniform(kw, (fin, fout), jnp.float32, -stdv, stdv)
        b = jax.random.uniform(kb, (fout,), jnp.float32, -stdv, stdv)
        params.append((w, b))
    return params


def reference_forward(x, adj, params):
    """Pure-JAX reference matching the kernel's bf16-operand / f32-accumulate precision."""
    adj_bf = adj.astype(jnp.bfloat16)

    def gcn(h, w, b):
        support = jnp.dot(h.astype(jnp.bfloat16), w.astype(jnp.bfloat16),
                          preferred_element_type=jnp.float32)
        out = jnp.dot(adj_bf, support.astype(jnp.bfloat16),
                      preferred_element_type=jnp.float32)
        return jnp.maximum(out + b, 0.0)

    subx = x
    agg = x
    for (w, b) in params[:-1]:
        subx = gcn(subx, w, b)
        agg = jnp.concatenate([agg, subx], axis=1)
    w_last, b_last = params[-1]
    return gcn(agg, w_last, b_last)


# --------------------------------------------------------------------------------- demo
if __name__ == "__main__":
    # Small, deterministic example consistent with the module:
    #   N nodes = 200, in_channels = 16, out_channels (hidden) = 32, nlayers = 2
    N = 200
    in_channels = 16
    out_channels = 32
    nlayers = 2

    key = jax.random.PRNGKey(0)
    k_x, k_adj, k_params = jax.random.split(key, 3)

    x = jax.random.normal(k_x, (N, in_channels), jnp.float32)

    # Dense symmetric row-normalized adjacency with self loops.
    a = (jax.random.uniform(k_adj, (N, N)) < 0.05).astype(jnp.float32)
    a = jnp.maximum(a, a.T) + jnp.eye(N, dtype=jnp.float32)
    deg_inv_sqrt = 1.0 / jnp.sqrt(jnp.sum(a, axis=1, keepdims=True))
    adj = a * deg_inv_sqrt * deg_inv_sqrt.T

    params = init_dense_jknet_params(k_params, in_channels, out_channels, nlayers)
    ref = reference_forward(x, adj, params)

    # Path 1: adjacency resident in VMEM (small graphs), multiple row tiles.
    out_res = dense_jknet_block_forward(x, adj, params, max_tm=128)
    out_res = jax.block_until_ready(out_res)
    assert out_res.shape == (N, out_channels), out_res.shape
    assert jnp.all(jnp.isfinite(out_res))
    assert jnp.allclose(out_res, ref, atol=2e-2, rtol=2e-2), float(jnp.max(jnp.abs(out_res - ref)))

    # Path 2: streamed adjacency row tiles (large-graph fallback), forced here to
    # exercise and validate both code paths.
    out_str = dense_jknet_block_forward(x, adj, params, force_streaming=True, max_tm=128)
    out_str = jax.block_until_ready(out_str)
    assert out_str.shape == (N, out_channels), out_str.shape
    assert jnp.all(jnp.isfinite(out_str))
    assert jnp.allclose(out_str, ref, atol=2e-2, rtol=2e-2), float(jnp.max(jnp.abs(out_str - ref)))

    print("KERNEL_OK")
</pallas_src>

<mosaic_0001>
module attributes {stable_mosaic.version = 11 : i64} {
  func.func @_jknet_fused_kernel(%arg0: i32, %arg1: i32, %arg2: memref<256x128xbf16, #tpu.memory_space<vmem>>, %arg3: memref<256x256xbf16, #tpu.memory_space<any>>, %arg4: memref<1x128x128xbf16, #tpu.memory_space<vmem>>, %arg5: memref<384x128xbf16, #tpu.memory_space<vmem>>, %arg6: memref<1x1x128xf32, #tpu.memory_space<vmem>>, %arg7: memref<128x128xf32, #tpu.memory_space<vmem>>, %arg8: memref<256x384xbf16, #tpu.memory_space<vmem>>, %arg9: memref<256x128xbf16, #tpu.memory_space<vmem>>, %arg10: memref<256x256xbf16, #tpu.memory_space<vmem>>, %arg11: memref<1x!tpu.dma_semaphore, #tpu.memory_space<semaphore_mem>>) attributes {dimension_semantics = [#tpu.dimension_semantics<arbitrary>, #tpu.dimension_semantics<arbitrary>], iteration_bounds = array<i64: 3, 2>, scalar_prefetch = 0 : i64, scratch_operands = 4 : i64, tpu.core_type = #tpu.core_type<tc>, window_params = [{pipeline_mode = #tpu.pipeline_mode<synchronous>, transform_indices = @transform_0, window_bounds = array<i64: 256, 128>}, {}, {transform_indices = @transform_2, window_bounds = array<i64: 1, 128, 128>}, {pipeline_mode = #tpu.pipeline_mode<synchronous>, transform_indices = @transform_3, window_bounds = array<i64: 384, 128>}, {transform_indices = @transform_4, window_bounds = array<i64: 1, 1, 128>}, {transform_indices = @transform_5, window_bounds = array<i64: 128, 128>}]} {
    %c0_i32 = arith.constant 0 : i32
    %0 = arith.cmpi eq, %arg0, %c0_i32 : i32
    %c0_i32_0 = arith.constant 0 : i32
    %1 = arith.cmpi eq, %arg1, %c0_i32_0 : i32
    %2 = arith.andi %0, %1 : i1
    %3 = arith.extui %2 : i1 to i32
    %c0_i32_1 = arith.constant 0 : i32
    %4 = arith.cmpi ne, %3, %c0_i32_1 : i32
    scf.if %4 {
      %c0_i32_18 = arith.constant 0 : i32
      %32 = tpu.memref_slice %arg11[%c0_i32_18] : memref<1x!tpu.dma_semaphore, #tpu.memory_space<semaphore_mem>> -> memref<1x!tpu.dma_semaphore, #tpu.memory_space<semaphore_mem>>
      %33 = tpu.memref_squeeze %32 : memref<1x!tpu.dma_semaphore, #tpu.memory_space<semaphore_mem>> -> memref<!tpu.dma_semaphore, #tpu.memory_space<semaphore_mem>>
      tpu.enqueue_dma source(%arg3 : memref<256x256xbf16, #tpu.memory_space<any>>) target(%arg10 : memref<256x256xbf16, #tpu.memory_space<vmem>>) target_semaphore(%33 : memref<!tpu.dma_semaphore, #tpu.memory_space<semaphore_mem>>)
      %cst_19 = arith.constant 0.000000e+00 : bf16
      %34 = vector.broadcast %cst_19 : bf16 to vector<256x384xbf16>
      %c0_20 = arith.constant 0 : index
      %c0_21 = arith.constant 0 : index
      %35 = vector.load %arg8[%c0_20, %c0_21] : memref<256x384xbf16, #tpu.memory_space<vmem>>, vector<256x384xbf16>
      tpu.vector_store %arg8[%c0_20, %c0_21], %34 {strides = array<i32>} : memref<256x384xbf16, #tpu.memory_space<vmem>>, vector<256x384xbf16>,
      %c0_22 = arith.constant 0 : index
      %c0_23 = arith.constant 0 : index
      %36 = vector.load %arg2[%c0_22, %c0_23] : memref<256x128xbf16, #tpu.memory_space<vmem>>, vector<256x128xbf16>
      %c0_24 = arith.constant 0 : index
      %c0_25 = arith.constant 0 : index
      %37 = vector.load %arg8[%c0_24, %c0_25] : memref<256x384xbf16, #tpu.memory_space<vmem>>, vector<256x128xbf16>
      tpu.vector_store %arg8[%c0_24, %c0_25], %36 {strides = array<i32>} : memref<256x384xbf16, #tpu.memory_space<vmem>>, vector<256x128xbf16>,
    } else {
    }
    %c0_i32_2 = arith.constant 0 : i32
    %5 = arith.cmpi eq, %arg1, %c0_i32_2 : i32
    %6 = arith.extui %5 : i1 to i32
    %c0_i32_3 = arith.constant 0 : i32
    %7 = arith.cmpi ne, %6, %c0_i32_3 : i32
    scf.if %7 {
      %c0_i32_18 = arith.constant 0 : i32
      %32 = arith.cmpi eq, %arg0, %c0_i32_18 : i32
      %33 = arith.extui %32 : i1 to i32
      %c0_i32_19 = arith.constant 0 : i32
      %34 = arith.cmpi ne, %33, %c0_i32_19 : i32
      scf.if %34 {
        %c0_23 = arith.constant 0 : index
        %c0_24 = arith.constant 0 : index
        %41 = vector.load %arg8[%c0_23, %c0_24] : memref<256x384xbf16, #tpu.memory_space<vmem>>, vector<256x128xbf16>
        %c0_25 = arith.constant 0 : index
        %c0_26 = arith.constant 0 : index
        %c0_27 = arith.constant 0 : index
        %42 = vector.load %arg4[%c0_25, %c0_26, %c0_27] : memref<1x128x128xbf16, #tpu.memory_space<vmem>>, vector<1x128x128xbf16>
        %43 = vector.shape_cast %42 : vector<1x128x128xbf16> to vector<128x128xbf16>
        %cst_28 = arith.constant dense<0.000000e+00> : vector<256x128xf32>
        %44 = tpu.matmul %41, %43, %cst_28 {dimension_numbers = #tpu.dot_dimension_numbers<[1], [0], [0], [1], [0, 0, 1, 1], [], []>} : vector<256x128xbf16>, vector<128x128xbf16>, vector<256x128xf32> -> vector<256x128xf32>
        %45 = arith.truncf %44 : vector<256x128xf32> to vector<256x128xbf16>
        %c0_29 = arith.constant 0 : index
        %c0_30 = arith.constant 0 : index
        %46 = vector.load %arg9[%c0_29, %c0_30] : memref<256x128xbf16, #tpu.memory_space<vmem>>, vector<256x128xbf16>
        tpu.vector_store %arg9[%c0_29, %c0_30], %45 {strides = array<i32>} : memref<256x128xbf16, #tpu.memory_space<vmem>>, vector<256x128xbf16>,
      } else {
      }
      %c1_i32_20 = arith.constant 1 : i32
      %35 = arith.cmpi eq, %arg0, %c1_i32_20 : i32
      %36 = arith.extui %35 : i1 to i32
      %c0_i32_21 = arith.constant 0 : i32
      %37 = arith.cmpi ne, %36, %c0_i32_21 : i32
      scf.if %37 {
        %c0_23 = arith.constant 0 : index
        %c128 = arith.constant 128 : index
        %41 = vector.load %arg8[%c0_23, %c128] : memref<256x384xbf16, #tpu.memory_space<vmem>>, vector<256x128xbf16>
        %c0_24 = arith.constant 0 : index
        %c0_25 = arith.constant 0 : index
        %c0_26 = arith.constant 0 : index
        %42 = vector.load %arg4[%c0_24, %c0_25, %c0_26] : memref<1x128x128xbf16, #tpu.memory_space<vmem>>, vector<1x128x128xbf16>
        %43 = vector.shape_cast %42 : vector<1x128x128xbf16> to vector<128x128xbf16>
        %cst_27 = arith.constant dense<0.000000e+00> : vector<256x128xf32>
        %44 = tpu.matmul %41, %43, %cst_27 {dimension_numbers = #tpu.dot_dimension_numbers<[1], [0], [0], [1], [0, 0, 1, 1], [], []>} : vector<256x128xbf16>, vector<128x128xbf16>, vector<256x128xf32> -> vector<256x128xf32>
        %45 = arith.truncf %44 : vector<256x128xf32> to vector<256x128xbf16>
        %c0_28 = arith.constant 0 : index
        %c0_29 = arith.constant 0 : index
        %46 = vector.load %arg9[%c0_28, %c0_29] : memref<256x128xbf16, #tpu.memory_space<vmem>>, vector<256x128xbf16>
        tpu.vector_store %arg9[%c0_28, %c0_29], %45 {strides = array<i32>} : memref<256x128xbf16, #tpu.memory_space<vmem>>, vector<256x128xbf16>,
      } else {
      }
      %c2_i32 = arith.constant 2 : i32
      %38 = arith.cmpi eq, %arg0, %c2_i32 : i32
      %39 = arith.extui %38 : i1 to i32
      %c0_i32_22 = arith.constant 0 : i32
      %40 = arith.cmpi ne, %39, %c0_i32_22 : i32
      scf.if %40 {
        %c0_23 = arith.constant 0 : index
        %c0_24 = arith.constant 0 : index
        %41 = vector.load %arg8[%c0_23, %c0_24] : memref<256x384xbf16, #tpu.memory_space<vmem>>, vector<256x384xbf16>
        %c0_25 = arith.constant 0 : index
        %c0_26 = arith.constant 0 : index
        %42 = vector.load %arg5[%c0_25, %c0_26] : memref<384x128xbf16, #tpu.memory_space<vmem>>, vector<384x128xbf16>
        %cst_27 = arith.constant dense<0.000000e+00> : vector<256x128xf32>
        %43 = tpu.matmul %41, %42, %cst_27 {dimension_numbers = #tpu.dot_dimension_numbers<[1], [0], [0], [1], [0, 0, 1, 1], [], []>} : vector<256x384xbf16>, vector<384x128xbf16>, vector<256x128xf32> -> vector<256x128xf32>
        %44 = arith.truncf %43 : vector<256x128xf32> to vector<256x128xbf16>
        %c0_28 = arith.constant 0 : index
        %c0_29 = arith.constant 0 : index
        %45 = vector.load %arg9[%c0_28, %c0_29] : memref<256x128xbf16, #tpu.memory_space<vmem>>, vector<256x128xbf16>
        tpu.vector_store %arg9[%c0_28, %c0_29], %44 {strides = array<i32>} : memref<256x128xbf16, #tpu.memory_space<vmem>>, vector<256x128xbf16>,
      } else {
      }
    } else {
    }
    %c0_i32_4 = arith.constant 0 : i32
    %8 = arith.cmpi eq, %arg0, %c0_i32_4 : i32
    %c0_i32_5 = arith.constant 0 : i32
    %9 = arith.cmpi eq, %arg1, %c0_i32_5 : i32
    %10 = arith.andi %8, %9 : i1
    %11 = arith.extui %10 : i1 to i32
    %c0_i32_6 = arith.constant 0 : i32
    %12 = arith.cmpi ne, %11, %c0_i32_6 : i32
    scf.if %12 {
      %c0_i32_18 = arith.constant 0 : i32
      %32 = tpu.memref_slice %arg11[%c0_i32_18] : memref<1x!tpu.dma_semaphore, #tpu.memory_space<semaphore_mem>> -> memref<1x!tpu.dma_semaphore, #tpu.memory_space<semaphore_mem>>
      %33 = tpu.memref_squeeze %32 : memref<1x!tpu.dma_semaphore, #tpu.memory_space<semaphore_mem>> -> memref<!tpu.dma_semaphore, #tpu.memory_space<semaphore_mem>>
      tpu.wait_dma2 semaphore(%33 : memref<!tpu.dma_semaphore, #tpu.memory_space<semaphore_mem>>) src(%arg3 : memref<256x256xbf16, #tpu.memory_space<any>>) dst(%arg10 : memref<256x256xbf16, #tpu.memory_space<vmem>>)
    } else {
    }
    %c128_i32 = arith.constant 128 : i32
    %13 = arith.muli %arg1, %c128_i32 : i32
    %14 = tpu.assume_multiple %13, 128 : i32
    %15 = arith.index_cast %14 : i32 to index
    %c0 = arith.constant 0 : index
    %16 = vector.load %arg10[%15, %c0] : memref<256x256xbf16, #tpu.memory_space<vmem>>, vector<128x256xbf16>
    %c0_7 = arith.constant 0 : index
    %c0_8 = arith.constant 0 : index
    %17 = vector.load %arg9[%c0_7, %c0_8] : memref<256x128xbf16, #tpu.memory_space<vmem>>, vector<256x128xbf16>
    %cst = arith.constant dense<0.000000e+00> : vector<128x128xf32>
    %18 = tpu.matmul %16, %17, %cst {dimension_numbers = #tpu.dot_dimension_numbers<[1], [0], [0], [1], [0, 0, 1, 1], [], []>} : vector<128x256xbf16>, vector<256x128xbf16>, vector<128x128xf32> -> vector<128x128xf32>
    %c0_9 = arith.constant 0 : index
    %c0_10 = arith.constant 0 : index
    %c0_11 = arith.constant 0 : index
    %19 = vector.load %arg6[%c0_9, %c0_10, %c0_11] : memref<1x1x128xf32, #tpu.memory_space<vmem>>, vector<1x1x128xf32>
    %20 = vector.shape_cast %19 : vector<1x1x128xf32> to vector<1x128xf32>
    %21 = vector.broadcast %20 : vector<1x128xf32> to vector<128x128xf32>
    %22 = arith.addf %18, %21 : vector<128x128xf32>
    %cst_12 = arith.constant 0.000000e+00 : f32
    %23 = vector.broadcast %cst_12 : f32 to vector<128x128xf32>
    %24 = arith.maximumf %22, %23 : vector<128x128xf32>
    %c0_i32_13 = arith.constant 0 : i32
    %25 = arith.cmpi eq, %arg0, %c0_i32_13 : i32
    %26 = arith.extui %25 : i1 to i32
    %c0_i32_14 = arith.constant 0 : i32
    %27 = arith.cmpi ne, %26, %c0_i32_14 : i32
    scf.if %27 {
      %32 = arith.truncf %24 : vector<128x128xf32> to vector<128x128xbf16>
      %33 = arith.index_cast %14 : i32 to index
      %c128 = arith.constant 128 : index
      %34 = vector.load %arg8[%33, %c128] : memref<256x384xbf16, #tpu.memory_space<vmem>>, vector<128x128xbf16>
      tpu.vector_store %arg8[%33, %c128], %32 {strides = array<i32>} : memref<256x384xbf16, #tpu.memory_space<vmem>>, vector<128x128xbf16>,
    } else {
    }
    %c1_i32 = arith.constant 1 : i32
    %28 = arith.cmpi eq, %arg0, %c1_i32 : i32
    %29 = arith.extui %28 : i1 to i32
    %c0_i32_15 = arith.constant 0 : i32
    %30 = arith.cmpi ne, %29, %c0_i32_15 : i32
    scf.if %30 {
      %32 = arith.truncf %24 : vector<128x128xf32> to vector<128x128xbf16>
      %33 = arith.index_cast %14 : i32 to index
      %c256 = arith.constant 256 : index
      %34 = vector.load %arg8[%33, %c256] : memref<256x384xbf16, #tpu.memory_space<vmem>>, vector<128x128xbf16>
      tpu.vector_store %arg8[%33, %c256], %32 {strides = array<i32>} : memref<256x384xbf16, #tpu.memory_space<vmem>>, vector<128x128xbf16>,
    } else {
    }
    %c0_16 = arith.constant 0 : index
    %c0_17 = arith.constant 0 : index
    %31 = vector.load %arg7[%c0_16, %c0_17] : memref<128x128xf32, #tpu.memory_space<vmem>>, vector<128x128xf32>
    tpu.vector_store %arg7[%c0_16, %c0_17], %24 {strides = array<i32>} : memref<128x128xf32, #tpu.memory_space<vmem>>, vector<128x128xf32>,
    return
  }
  func.func @transform_0(%arg0: i32, %arg1: i32) -> (i32, i32) {
    %c0_i32 = arith.constant 0 : i32
    %c0_i32_0 = arith.constant 0 : i32
    %c0_i32_1 = arith.constant 0 : i32
    return %c0_i32, %c0_i32_0 : i32, i32
  }
  func.func @transform_2(%arg0: i32, %arg1: i32) -> (i32, i32, i32) {
    %c0_i32 = arith.constant 0 : i32
    %c0_i32_0 = arith.constant 0 : i32
    %c0_i32_1 = arith.constant 0 : i32
    return %arg0, %c0_i32, %c0_i32_0 : i32, i32, i32
  }
  func.func @transform_3(%arg0: i32, %arg1: i32) -> (i32, i32) {
    %c0_i32 = arith.constant 0 : i32
    %c0_i32_0 = arith.constant 0 : i32
    %c0_i32_1 = arith.constant 0 : i32
    return %c0_i32, %c0_i32_0 : i32, i32
  }
  func.func @transform_4(%arg0: i32, %arg1: i32) -> (i32, i32, i32) {
    %c0_i32 = arith.constant 0 : i32
    %c0_i32_0 = arith.constant 0 : i32
    %c0_i32_1 = arith.constant 0 : i32
    return %arg0, %c0_i32, %c0_i32_0 : i32, i32, i32
  }
  func.func @transform_5(%arg0: i32, %arg1: i32) -> (i32, i32) {
    %c0_i32 = arith.constant 0 : i32
    %c0_i32_0 = arith.constant 0 : i32
    return %arg1, %c0_i32 : i32, i32
  }
}

</mosaic_0001>

<llo_original>
// kernel: tpu_custom_call.1
$region0: #{tpu_custom_call.1}
  #allocation0 [shape = 'u32[]', space=smem, size = 0x4, offset = 0x4, fixed_abs, tag = 'smem constant byte address 0x4 - core index']
  #allocation1 [shape = 'u32[144,128]{1,0:T(1,128)}', space=vmem, size = 0x12000, scoped, tag = 'internal scratch']
  #allocation2 [shape = 'bf16[256,384]{1,0:T(16,128)(2,1)}', space=vmem, size = 0x30000, scoped, tag = 'scratch operand']
  #allocation3 [shape = 'bf16[256,128]{1,0:T(16,128)(2,1)}', space=vmem, size = 0x10000, scoped, tag = 'scratch operand']
  #allocation4 [shape = 'bf16[256,256]{1,0:T(16,128)(2,1)}', space=vmem, size = 0x20000, scoped, tag = 'scratch operand']
  #allocation5 [shape = 's32[1]{0}', space=sflag, size = 0x4, scoped, tag = 'scratch operand']
  #allocation13 [shape = 's32[]', space=sflag, size = 0x4, offset = 0, fixed_abs, tag = 'sflag constant byte address 0x0 - dummy sync flag']
  %s0 = inlined_call_operand.hbm [shape: bf16[256,128], index: 0, kind: input, shape index: {}]
  %s1 = inlined_call_operand.hbm [shape: bf16[256,256], index: 1, kind: input, shape index: {}]
  %s2 = inlined_call_operand.hbm [shape: bf16[3,128,128], index: 2, kind: input, shape index: {}]
  %s3 = inlined_call_operand.hbm [shape: bf16[384,128], index: 3, kind: input, shape index: {}]
  %s4 = inlined_call_operand.vmem [shape: f32[3,1,128], index: 4, kind: input, shape index: {}]
  %s5 = inlined_call_operand.hbm [shape: f32[256,128], index: 5, kind: output, shape index: {}]
  %s6 = sld [smem:[#allocation0]]
  $region93: #{tpu_custom_call.1} parent=0
    _
  %s8 = ssub.s32 1, %s6
  %s9 = scalar_select 0, %s8, %s6
  $region1: #{tpu_custom_call.1} parent=0
    #allocation6 [shape = 'u8[65536]{0}', space=vmem, size = 0x10000, scoped, tag = 'input window, operand 0, single buffered']
    #allocation7 [shape = 's32[2]{0}', space=sflag, size = 0x8, scoped, tag = 'scoped memory for tpu_custom_call.1']
    #allocation8 [shape = 's32[2]{0}', space=sflag, size = 0x8, scoped, tag = 'scoped memory for tpu_custom_call.1']
    #allocation9 [shape = 'u8[65536]{0}', space=vmem, size = 0x10000, scoped, tag = 'input window, operand 2']
    #allocation10 [shape = 's32[2]{0}', space=sflag, size = 0x8, scoped, tag = 'scoped memory for tpu_custom_call.1']
    #allocation11 [shape = 'u8[98304]{0}', space=vmem, size = 0x18000, scoped, tag = 'input window, operand 3, single buffered']
    #allocation12 [shape = 'u8[131072]{0}', space=vmem, size = 0x20000, scoped, tag = 'output window, operand 0']
    %10 = vsyncpa [#allocation7], 0
    %11 = vsyncpa [#allocation10], 0
    %s12 = scalar_lea.sflag [#allocation10], 1
    %13 = vsyncpa %s12, 0
    %14 = vsyncpa [#allocation8], 0
    %s15 = scalar_lea.sflag [#allocation8], 1
    %16 = vsyncpa %s15, 0
    loop: start=0, step=1, limit=8
    $region2: #{tpu_custom_call.1} parent=1 // loop_pre_header
      _
    $region3: #{tpu_custom_call.1} parent=1 // loop_header
      %s18 = sphi 0, %s22
      %p19 = scmp.ge.s32.totalorder %s18, 8
      %s25 = sphi 0, %s37
      %s26 = sphi 0, %s33
      %s27 = sphi 0, %s25
      %s28 = sphi 0, %s26
      %s29 = sphi 0, %s27
      %s30 = sphi 0, %s28
      %s38 = sphi 0, %s38
      %s40 = sphi 0, %s38
      %s41 = sphi 0, %s40
      %s55 = sphi 0, %s41
      %s61 = sphi 0, %s63
      %s64 = sphi 0, %s61
      %s65 = sphi 0, %s64
      %s81 = sphi 0, %s65
      %s85 = sphi 0, %s85
      %s87 = sphi 0, %s85
      %s88 = sphi 0, %s87
      %s102 = sphi 0, %s88
      %s108 = sphi 0, %s110
      %s111 = sphi 0, %s108
      %s112 = sphi 0, %s111
      %s128 = sphi 0, %s112
      %s134 = sphi 0, %s136
      %s137 = sphi 0, %s134
      %s138 = sphi 0, %s137
      %s154 = sphi 0, %s138
    $region4: #{tpu_custom_call.1} parent=1 // loop_header_branch
      %21 = sbr.rel (%p19) target = $region8
    $region5: #{tpu_custom_call.1} parent=1 // loop_body
      %s23 = ssub.s32 %s18, 1
      %s24 = ssub.s32 %s18, 2
      %s31 = sadd.s32 1, %s26
      %p32 = scmp.ge.s32.totalorder %s31, 2
      %s33 = scalar_select %p32, 0, %s31
      %s34 = sadd.s32 1, %s25
      %s35 = scalar_select %p32, %s34, %s25
      %p36 = scmp.ge.s32.totalorder %s35, 3
      %s37 = scalar_select %p36, 0, %s35
      %s39 = sadd.s32 %s38, 1
      %p42 = scmp.eq.s32.totalorder %s18, 5
      %p43 = scmp.ne.s32.totalorder %s38, %s40
      %p44 = scmp.eq.s32.totalorder %s18, 0
      %p45 = por %p43, %p44
      %p46 = scmp.ne.s32.totalorder %s38, %s40
      %p47 = scmp.eq.s32.totalorder %s23, 5
      %p48 = por %p46, %p47
      %p49 = scmp.ne.s32.totalorder %s40, %s41
      %p50 = scmp.eq.s32.totalorder %s23, 0
      %p51 = por %p49, %p50
      %p52 = scmp.ne.s32.totalorder %s40, %s41
      %p53 = scmp.eq.s32.totalorder %s24, 5
      %p54 = por %p52, %p53
      %p56 = scmp.ne.s32.totalorder %s41, %s55
      %p57 = scmp.eq.s32.totalorder %s24, 0
      %p58 = por %p56, %p57
      %s59 = ssub.s32 %s25, %s37
      %p60 = scmp.eq.s32.totalorder %s59, 0
      %s62 = sadd.s32 %s61, 1
      %s63 = scalar_select %p60, %s61, %s62
      %p66 = pneg %p60
      %p67 = scmp.eq.s32.totalorder %s18, 5
      %p68 = por %p66, %p67
      %p69 = scmp.ne.s32.totalorder %s61, %s64
      %p70 = scmp.eq.s32.totalorder %s18, 0
      %p71 = por %p69, %p70
      %p72 = scmp.ne.s32.totalorder %s61, %s64
      %p73 = scmp.eq.s32.totalorder %s23, 5
      %p74 = por %p72, %p73
      %p75 = scmp.ne.s32.totalorder %s64, %s65
      %p76 = scmp.eq.s32.totalorder %s23, 0
      %p77 = por %p75, %p76
      %p78 = scmp.ne.s32.totalorder %s64, %s65
      %p79 = scmp.eq.s32.totalorder %s24, 5
      %p80 = por %p78, %p79
      %p82 = scmp.ne.s32.totalorder %s65, %s81
      %p83 = scmp.eq.s32.totalorder %s24, 0
      %p84 = por %p82, %p83
      %s86 = sadd.s32 %s85, 1
      %p89 = scmp.eq.s32.totalorder %s18, 5
      %p90 = scmp.ne.s32.totalorder %s85, %s87
      %p91 = scmp.eq.s32.totalorder %s18, 0
      %p92 = por %p90, %p91
      %p93 = scmp.ne.s32.totalorder %s85, %s87
      %p94 = scmp.eq.s32.totalorder %s23, 5
      %p95 = por %p93, %p94
      %p96 = scmp.ne.s32.totalorder %s87, %s88
      %p97 = scmp.eq.s32.totalorder %s23, 0
      %p98 = por %p96, %p97
      %p99 = scmp.ne.s32.totalorder %s87, %s88
      %p100 = scmp.eq.s32.totalorder %s24, 5
      %p101 = por %p99, %p100
      %p103 = scmp.ne.s32.totalorder %s88, %s102
      %p104 = scmp.eq.s32.totalorder %s24, 0
      %p105 = por %p103, %p104
      %s106 = ssub.s32 %s25, %s37
      %p107 = scmp.eq.s32.totalorder %s106, 0
      %s109 = sadd.s32 %s108, 1
      %s110 = scalar_select %p107, %s108, %s109
      %p113 = pneg %p107
      %p114 = scmp.eq.s32.totalorder %s18, 5
      %p115 = por %p113, %p114
      %p116 = scmp.ne.s32.totalorder %s108, %s111
      %p117 = scmp.eq.s32.totalorder %s18, 0
      %p118 = por %p116, %p117
      %p119 = scmp.ne.s32.totalorder %s108, %s111
      %p120 = scmp.eq.s32.totalorder %s23, 5
      %p121 = por %p119, %p120
      %p122 = scmp.ne.s32.totalorder %s111, %s112
      %p123 = scmp.eq.s32.totalorder %s23, 0
      %p124 = por %p122, %p123
      %p125 = scmp.ne.s32.totalorder %s111, %s112
      %p126 = scmp.eq.s32.totalorder %s24, 5
      %p127 = por %p125, %p126
      %p129 = scmp.ne.s32.totalorder %s112, %s128
      %p130 = scmp.eq.s32.totalorder %s24, 0
      %p131 = por %p129, %p130
      %s132 = ssub.s32 %s26, %s33
      %p133 = scmp.eq.s32.totalorder %s132, 0
      %s135 = sadd.s32 %s134, 1
      %s136 = scalar_select %p133, %s134, %s135
      %p139 = pneg %p133
      %p140 = scmp.eq.s32.totalorder %s18, 5
      %p141 = por %p139, %p140
      %p142 = scmp.ne.s32.totalorder %s134, %s137
      %p143 = scmp.eq.s32.totalorder %s18, 0
      %p144 = por %p142, %p143
      %p145 = scmp.ne.s32.totalorder %s134, %s137
      %p146 = scmp.eq.s32.totalorder %s23, 5
      %p147 = por %p145, %p146
      %p148 = scmp.ne.s32.totalorder %s137, %s138
      %p149 = scmp.eq.s32.totalorder %s23, 0
      %p150 = por %p148, %p149
      %p151 = scmp.ne.s32.totalorder %s137, %s138
      %p152 = scmp.eq.s32.totalorder %s24, 5
      %p153 = por %p151, %p152
      %p155 = scmp.ne.s32.totalorder %s138, %s154
      %p156 = scmp.eq.s32.totalorder %s24, 0
      %p157 = por %p155, %p156
      %p158 = scmp.le.s32.totalorder 1, %s18
      %p159 = scmp.lt.s32.totalorder %s18, 7
      %p160 = pnand %p158, %p159
      %p161 = pneg %p160
      // Predicated region
      $region9: #{tpu_custom_call.1} parent=5 // pred_check
        _
      $region10: #{tpu_custom_call.1} parent=5 // pred_check_branch
        %163 = sbr.rel (%p160) target = $region12
      $region11: #{tpu_custom_call.1} parent=5 // pred_region
        %s164 = ssub.s32 %s18, 1
        // Predicated region
        $region13: #{tpu_custom_call.1} parent=11 // pred_check
          %p165 = pneg %p51
        $region14: #{tpu_custom_call.1} parent=11 // pred_check_branch
          %167 = sbr.rel (%p165) target = $region16
        $region15: #{tpu_custom_call.1} parent=11 // pred_region
          %s169 = ssub.s32 2048, 2048
          %170 = vsyncadd [#allocation7], %s169
          %s171 = sshll.u32 [#allocation6], 4
          %s172 = int_to_ptr.vmem [resolvable:$true] %s171
          %177 = dma.hbm_to_vmem [thread:$0]  %s0, 2048, %s172, [#allocation7], 64, 64, 4
        $region16: #{tpu_custom_call.1} parent=11 // pred_fallthru
          _
        // Predicated region
        $region17: #{tpu_custom_call.1} parent=11 // pred_check
          %p178 = pneg %p98
        $region18: #{tpu_custom_call.1} parent=11 // pred_check_branch
          %180 = sbr.rel (%p178) target = $region20
        $region19: #{tpu_custom_call.1} parent=11 // pred_region
          %s182 = ssub.s32 3072, 3072
          %183 = vsyncadd [#allocation10], %s182
          %s184 = sshll.u32 [#allocation11], 4
          %s185 = int_to_ptr.vmem [resolvable:$true] %s184
          %190 = dma.hbm_to_vmem [thread:$0]  %s3, 3072, %s185, [#allocation10], 64, 64, 4
        $region20: #{tpu_custom_call.1} parent=11 // pred_fallthru
          _
      $region12: #{tpu_custom_call.1} parent=5 // pred_fallthru
        _
      %p191 = scmp.lt.s32.totalorder %s18, 6
      // Predicated region
      $region21: #{tpu_custom_call.1} parent=5 // pred_check
        %p192 = pneg %p191
      $region22: #{tpu_custom_call.1} parent=5 // pred_check_branch
        %194 = sbr.rel (%p192) target = $region24
      $region23: #{tpu_custom_call.1} parent=5 // pred_region
        // Predicated region
        $region25: #{tpu_custom_call.1} parent=23 // pred_check
          %p195 = pneg %p71
        $region26: #{tpu_custom_call.1} parent=23 // pred_check_branch
          %197 = sbr.rel (%p195) target = $region28
        $region27: #{tpu_custom_call.1} parent=23 // pred_region
          %s198 = sand.u32 %s18, 1
          %s199 = scalar_lea.sflag [#allocation10], %s198
          %s200 = sand.u32 %s61, 1
          %s201 = smul.addr %s200, 64
          %s202 = scalar_lea.vmem [#allocation9], %s201
          %s204 = ssub.s32 1024, 1024
          %205 = vsyncadd %s199, %s204
          %s206 = smul.addr %s25, 16
          %s207 = smul.addr %s206, 64
          %s208 = scalar_lea.hbm %s2, %s207
          %s209 = sshll.u32 %s202, 4
          %s210 = int_to_ptr.vmem [resolvable:$true] %s209
          %215 = dma.hbm_to_vmem [thread:$0]  %s208, 1024, %s210, %s199, 64, 64, 4
        $region28: #{tpu_custom_call.1} parent=23 // pred_fallthru
          _
        // Predicated region
        $region29: #{tpu_custom_call.1} parent=23 // pred_check
          %p216 = pneg %p118
        $region30: #{tpu_custom_call.1} parent=23 // pred_check_branch
          %218 = sbr.rel (%p216) target = $region32
        $region31: #{tpu_custom_call.1} parent=23 // pred_region
          %p219 = scmp.lt.s32.totalorder %s25, 2
          %s220 = scalar_select %p219, %s25, 2
          %s221 = scalar_lea.vmem %s4, %s220
        $region32: #{tpu_custom_call.1} parent=23 // pred_fallthru
          _
      $region24: #{tpu_custom_call.1} parent=5 // pred_fallthru
        _
      %p222 = scmp.le.s32.totalorder 1, %s18
      %p223 = scmp.lt.s32.totalorder %s18, 7
      %p224 = pnand %p222, %p223
      %p225 = pneg %p224
      // Predicated region
      $region33: #{tpu_custom_call.1} parent=5 // pred_check
        _
      $region34: #{tpu_custom_call.1} parent=5 // pred_check_branch
        %227 = sbr.rel (%p224) target = $region36
      $region35: #{tpu_custom_call.1} parent=5 // pred_region
        %s228 = ssub.s32 %s18, 1
        // Predicated region
        $region37: #{tpu_custom_call.1} parent=35 // pred_check
          %p229 = pneg %p51
        $region38: #{tpu_custom_call.1} parent=35 // pred_check_branch
          %231 = sbr.rel (%p229) target = $region40
        $region39: #{tpu_custom_call.1} parent=35 // pred_region
          %232 = dma.done [#allocation7], 2048
        $region40: #{tpu_custom_call.1} parent=35 // pred_fallthru
          _
        %s233 = sand.u32 %s23, 1
        %s234 = scalar_lea.sflag [#allocation10], %s233
        %s235 = sand.u32 %s64, 1
        %s236 = smul.addr %s235, 64
        %s237 = scalar_lea.vmem [#allocation9], %s236
        // Predicated region
        $region41: #{tpu_custom_call.1} parent=35 // pred_check
          %p238 = pneg %p77
        $region42: #{tpu_custom_call.1} parent=35 // pred_check_branch
          %240 = sbr.rel (%p238) target = $region44
        $region43: #{tpu_custom_call.1} parent=35 // pred_region
          %241 = dma.done %s234, 1024
        $region44: #{tpu_custom_call.1} parent=35 // pred_fallthru
          _
        // Predicated region
        $region45: #{tpu_custom_call.1} parent=35 // pred_check
          %p242 = pneg %p98
        $region46: #{tpu_custom_call.1} parent=35 // pred_check_branch
          %244 = sbr.rel (%p242) target = $region48
        $region47: #{tpu_custom_call.1} parent=35 // pred_region
          %245 = dma.done [#allocation10], 3072
        $region48: #{tpu_custom_call.1} parent=35 // pred_fallthru
          _
        %p246 = pneg %p51
        %p247 = pneg %p48
        %s248 = sand.u32 %s23, 1
        %s249 = scalar_lea.sflag [#allocation10], %s248
        %s250 = sand.u32 %s64, 1
        %s251 = smul.addr %s250, 64
        %s252 = scalar_lea.vmem [#allocation9], %s251
        %p253 = pneg %p77
        %p254 = pneg %p74
        %p255 = pneg %p98
        %p256 = pneg %p95
        %p257 = scmp.lt.s32.totalorder %s27, 2
        %s258 = scalar_select %p257, %s27, 2
        %s259 = scalar_lea.vmem %s4, %s258
        %p260 = pneg %p124
        %p261 = pneg %p121
        %p262 = pneg %p150
        %p263 = pneg %p147
        %s264 = sand.u32 %s137, 1
        %s265 = scalar_lea.sflag [#allocation8], %s264
        %s266 = sand.u32 %s137, 1
        %s267 = smul.addr %s266, 128
        %s268 = scalar_lea.vmem [#allocation12], %s267
        %p269 = scmp.lt.s32.totalorder %s27, 2
        %s270 = scalar_select %p269, %s27, 2
        %s271 = scalar_lea.vmem %s4, %s270
        %s272 = smul.u32 16, %s28
        %p274 = scmp.eq.s32.totalorder %s27, 0
        %p275 = scmp.eq.s32.totalorder %s28, 0
        %p276 = pnand %p274, %p275
        %p277 = pneg %p276
        // Predicated region
        $region49: #{tpu_custom_call.1} parent=35 // pred_check
          _
        $region50: #{tpu_custom_call.1} parent=35 // pred_check_branch
          %279 = sbr.rel (%p276) target = $region52
        $region51: #{tpu_custom_call.1} parent=35 // pred_region
          #allocation14 [shape = 'u32[9]{0}', space=smem, size = 0x24, scoped, tag = 'DMA stride descriptor']
          %s281 = sshll.u32 1, 14
          %s282 = sxor.u32 4294967295, %s281
          %s284 = sld [smem:[#allocation0]]
          %s285 = sadd.s32 2, %s284
          %s287 = sshll.u32 7, 26
          %s288 = sxor.u32 4294967295, %s287
          %s289 = sand.u32 0, %s288
          %s290 = sshll.u32 %s285, 26
          %s291 = sor.u32 %s289, %s290
          %s292 = sshll.u32 [#allocation4], 4
          %s293 = int_to_ptr.vmem [resolvable:$true] %s292
          %296 = sst [smem:[#allocation14]] 256
          %s297 = scalar_lea.smem [#allocation14], 1
          %298 = sst [smem:[%s297]] 256
          %s299 = scalar_lea.smem [#allocation14], 2
          %300 = sst [smem:[%s299]] 2
          %s301 = scalar_lea.smem [#allocation14], 3
          %302 = sst [smem:[%s301]] 64
          %s303 = scalar_lea.smem [#allocation14], 4
          %304 = sst [smem:[%s303]] 128
          %s305 = scalar_lea.smem [#allocation14], 5
          %306 = sst [smem:[%s305]] 2
          %s307 = scalar_lea.smem [#allocation14], 6
          %308 = sst [smem:[%s307]] 128
          %s309 = scalar_lea.smem [#allocation14], 7
          %310 = sst [smem:[%s309]] 64
          %s311 = scalar_lea.smem [#allocation14], 8
          %312 = sst [smem:[%s311]] 4
          %314 = dma.general %s1, 4096, %s293, [#allocation5], [#allocation13], [#allocation14], %s291, 0
          %315 = vst [vmem:[#allocation2] sm:$0xff] 0
          %316 = vst [vmem:[#allocation2 + $0x8] sm:$0xff] 0
          %317 = vst [vmem:[#allocation2 + $0x10] sm:$0xff] 0
          %318 = vst [vmem:[#allocation2 + $0x18] sm:$0xff] 0
          %319 = vst [vmem:[#allocation2 + $0x20] sm:$0xff] 0
          %320 = vst [vmem:[#allocation2 + $0x28] sm:$0xff] 0
          %321 = vst [vmem:[#allocation2 + $0x30] sm:$0xff] 0
          %322 = vst [vmem:[#allocation2 + $0x38] sm:$0xff] 0
          %323 = vst [vmem:[#allocation2 + $0x40] sm:$0xff] 0
          %324 = vst [vmem:[#allocation2 + $0x48] sm:$0xff] 0
          %325 = vst [vmem:[#allocation2 + $0x50] sm:$0xff] 0
          %326 = vst [vmem:[#allocation2 + $0x58] sm:$0xff] 0
          %327 = vst [vmem:[#allocation2 + $0x60] sm:$0xff] 0
          %328 = vst [vmem:[#allocation2 + $0x68] sm:$0xff] 0
          %329 = vst [vmem:[#allocation2 + $0x70] sm:$0xff] 0
          %330 = vst [vmem:[#allocation2 + $0x78] sm:$0xff] 0
          %331 = vst [vmem:[#allocation2 + $0x80] sm:$0xff] 0
          %332 = vst [vmem:[#allocation2 + $0x88] sm:$0xff] 0
          %333 = vst [vmem:[#allocation2 + $0x90] sm:$0xff] 0
          %334 = vst [vmem:[#allocation2 + $0x98] sm:$0xff] 0
          %335 = vst [vmem:[#allocation2 + $0xa0] sm:$0xff] 0
          %336 = vst [vmem:[#allocation2 + $0xa8] sm:$0xff] 0
          %337 = vst [vmem:[#allocation2 + $0xb0] sm:$0xff] 0
          %338 = vst [vmem:[#allocation2 + $0xb8] sm:$0xff] 0
          %339 = vst [vmem:[#allocation2 + $0xc0] sm:$0xff] 0
          %340 = vst [vmem:[#allocation2 + $0xc8] sm:$0xff] 0
          %341 = vst [vmem:[#allocation2 + $0xd0] sm:$0xff] 0
          %342 = vst [vmem:[#allocation2 + $0xd8] sm:$0xff] 0
          %343 = vst [vmem:[#allocation2 + $0xe0] sm:$0xff] 0
          %344 = vst [vmem:[#allocation2 + $0xe8] sm:$0xff] 0
          %345 = vst [vmem:[#allocation2 + $0xf0] sm:$0xff] 0
          %346 = vst [vmem:[#allocation2 + $0xf8] sm:$0xff] 0
          %347 = vst [vmem:[#allocation2 + $0x100] sm:$0xff] 0
          %348 = vst [vmem:[#allocation2 + $0x108] sm:$0xff] 0
          %349 = vst [vmem:[#allocation2 + $0x110] sm:$0xff] 0
          %350 = vst [vmem:[#allocation2 + $0x118] sm:$0xff] 0
          %351 = vst [vmem:[#allocation2 + $0x120] sm:$0xff] 0
          %352 = vst [vmem:[#allocation2 + $0x128] sm:$0xff] 0
          %353 = vst [vmem:[#allocation2 + $0x130] sm:$0xff] 0
          %354 = vst [vmem:[#allocation2 + $0x138] sm:$0xff] 0
          %355 = vst [vmem:[#allocation2 + $0x140] sm:$0xff] 0
          %356 = vst [vmem:[#allocation2 + $0x148] sm:$0xff] 0
          %357 = vst [vmem:[#allocation2 + $0x150] sm:$0xff] 0
          %358 = vst [vmem:[#allocation2 + $0x158] sm:$0xff] 0
          %359 = vst [vmem:[#allocation2 + $0x160] sm:$0xff] 0
          %360 = vst [vmem:[#allocation2 + $0x168] sm:$0xff] 0
          %361 = vst [vmem:[#allocation2 + $0x170] sm:$0xff] 0
          %362 = vst [vmem:[#allocation2 + $0x178] sm:$0xff] 0
          %v363 = vld [vmem:[#allocation6] sm:$0xf]
          %v364 = vld [vmem:[#allocation6 + $0x4] sm:$0xf]
          %v365 = vld [vmem:[#allocation6 + $0x8] sm:$0xf]
          %v366 = vld [vmem:[#allocation6 + $0xc] sm:$0xf]
          %v367 = vld [vmem:[#allocation6 + $0x10] sm:$0xf]
          %v368 = vld [vmem:[#allocation6 + $0x14] sm:$0xf]
          %v369 = vld [vmem:[#allocation6 + $0x18] sm:$0xf]
          %v370 = vld [vmem:[#allocation6 + $0x1c] sm:$0xf]
          %v371 = vld [vmem:[#allocation6 + $0x20] sm:$0xf]
          %v372 = vld [vmem:[#allocation6 + $0x24] sm:$0xf]
          %v373 = vld [vmem:[#allocation6 + $0x28] sm:$0xf]
          %v374 = vld [vmem:[#allocation6 + $0x2c] sm:$0xf]
          %v375 = vld [vmem:[#allocation6 + $0x30] sm:$0xf]
          %v376 = vld [vmem:[#allocation6 + $0x34] sm:$0xf]
          %v377 = vld [vmem:[#allocation6 + $0x38] sm:$0xf]
          %v378 = vld [vmem:[#allocation6 + $0x3c] sm:$0xf]
          %v379 = vld [vmem:[#allocation6 + $0x40] sm:$0xf]
          %v380 = vld [vmem:[#allocation6 + $0x44] sm:$0xf]
          %v381 = vld [vmem:[#allocation6 + $0x48] sm:$0xf]
          %v382 = vld [vmem:[#allocation6 + $0x4c] sm:$0xf]
          %v383 = vld [vmem:[#allocation6 + $0x50] sm:$0xf]
          %v384 = vld [vmem:[#allocation6 + $0x54] sm:$0xf]
          %v385 = vld [vmem:[#allocation6 + $0x58] sm:$0xf]
          %v386 = vld [vmem:[#allocation6 + $0x5c] sm:$0xf]
          %v387 = vld [vmem:[#allocation6 + $0x60] sm:$0xf]
          %v388 = vld [vmem:[#allocation6 + $0x64] sm:$0xf]
          %v389 = vld [vmem:[#allocation6 + $0x68] sm:$0xf]
          %v390 = vld [vmem:[#allocation6 + $0x6c] sm:$0xf]
          %v391 = vld [vmem:[#allocation6 + $0x70] sm:$0xf]
          %v392 = vld [vmem:[#allocation6 + $0x74] sm:$0xf]
          %v393 = vld [vmem:[#allocation6 + $0x78] sm:$0xf]
          %v394 = vld [vmem:[#allocation6 + $0x7c] sm:$0xf]
          %v427 = vunpack.c.l.b16 %v363
          %v428 = vunpack.c.l.b16 %v364
          %v429 = vunpack.c.l.b16 %v365
          %v430 = vunpack.c.l.b16 %v366
          %v431 = vunpack.c.l.b16 %v367
          %v432 = vunpack.c.l.b16 %v368
          %v433 = vunpack.c.l.b16 %v369
          %v434 = vunpack.c.l.b16 %v370
          %v435 = vunpack.c.l.b16 %v371
          %v436 = vunpack.c.l.b16 %v372
          %v437 = vunpack.c.l.b16 %v373
          %v438 = vunpack.c.l.b16 %v374
          %v439 = vunpack.c.l.b16 %v375
          %v440 = vunpack.c.l.b16 %v376
          %v441 = vunpack.c.l.b16 %v377
          %v442 = vunpack.c.l.b16 %v378
          %v443 = vunpack.c.l.b16 %v379
          %v444 = vunpack.c.l.b16 %v380
          %v445 = vunpack.c.l.b16 %v381
          %v446 = vunpack.c.l.b16 %v382
          %v447 = vunpack.c.l.b16 %v383
          %v448 = vunpack.c.l.b16 %v384
          %v449 = vunpack.c.l.b16 %v385
          %v450 = vunpack.c.l.b16 %v386
          %v451 = vunpack.c.l.b16 %v387
          %v452 = vunpack.c.l.b16 %v388
          %v453 = vunpack.c.l.b16 %v389
          %v454 = vunpack.c.l.b16 %v390
          %v455 = vunpack.c.l.b16 %v391
          %v456 = vunpack.c.l.b16 %v392
          %v457 = vunpack.c.l.b16 %v393
          %v458 = vunpack.c.l.b16 %v394
          %v459 = vpack.c.b16 %v428, %v427
          %v460 = vpack.c.b16 %v430, %v429
          %v461 = vpack.c.b16 %v432, %v431
          %v462 = vpack.c.b16 %v434, %v433
          %v463 = vpack.c.b16 %v436, %v435
          %v464 = vpack.c.b16 %v438, %v437
          %v465 = vpack.c.b16 %v440, %v439
          %v466 = vpack.c.b16 %v442, %v441
          %v467 = vpack.c.b16 %v444, %v443
          %v468 = vpack.c.b16 %v446, %v445
          %v469 = vpack.c.b16 %v448, %v447
          %v470 = vpack.c.b16 %v450, %v449
          %v471 = vpack.c.b16 %v452, %v451
          %v472 = vpack.c.b16 %v454, %v453
          %v473 = vpack.c.b16 %v456, %v455
          %v474 = vpack.c.b16 %v458, %v457
          %491 = vst [vmem:[#allocation2] sm:$0xff] %v459
          %492 = vst [vmem:[#allocation2 + $0x18] sm:$0xff] %v460
          %493 = vst [vmem:[#allocation2 + $0x30] sm:$0xff] %v461
          %494 = vst [vmem:[#allocation2 + $0x48] sm:$0xff] %v462
          %495 = vst [vmem:[#allocation2 + $0x60] sm:$0xff] %v463
          %496 = vst [vmem:[#allocation2 + $0x78] sm:$0xff] %v464
          %497 = vst [vmem:[#allocation2 + $0x90] sm:$0xff] %v465
          %498 = vst [vmem:[#allocation2 + $0xa8] sm:$0xff] %v466
          %499 = vst [vmem:[#allocation2 + $0xc0] sm:$0xff] %v467
          %500 = vst [vmem:[#allocation2 + $0xd8] sm:$0xff] %v468
          %501 = vst [vmem:[#allocation2 + $0xf0] sm:$0xff] %v469
          %502 = vst [vmem:[#allocation2 + $0x108] sm:$0xff] %v470
          %503 = vst [vmem:[#allocation2 + $0x120] sm:$0xff] %v471
          %504 = vst [vmem:[#allocation2 + $0x138] sm:$0xff] %v472
          %505 = vst [vmem:[#allocation2 + $0x150] sm:$0xff] %v473
          %506 = vst [vmem:[#allocation2 + $0x168] sm:$0xff] %v474
        $region52: #{tpu_custom_call.1} parent=35 // pred_fallthru
          _
        // Predicated region
        $region53: #{tpu_custom_call.1} parent=35 // pred_check
          %p507 = pneg %p275
        $region54: #{tpu_custom_call.1} parent=35 // pred_check_branch
          %509 = sbr.rel (%p507) target = $region56
        $region55: #{tpu_custom_call.1} parent=35 // pred_region
          // Predicated region
          $region57: #{tpu_custom_call.1} parent=55 // pred_check
            %p510 = pneg %p274
          $region58: #{tpu_custom_call.1} parent=55 // pred_check_branch
            %512 = sbr.rel (%p510) target = $region60
          $region59: #{tpu_custom_call.1} parent=55 // pred_region
            %v513 = vld [vmem:[#allocation2] sm:$0xff]
            %v514 = vld [vmem:[#allocation2 + $0x18] sm:$0xff]
            %v515 = vld [vmem:[#allocation2 + $0x30] sm:$0xff]
            %v516 = vld [vmem:[#allocation2 + $0x48] sm:$0xff]
            %v517 = vld [vmem:[#allocation2 + $0x60] sm:$0xff]
            %v518 = vld [vmem:[#allocation2 + $0x78] sm:$0xff]
            %v519 = vld [vmem:[#allocation2 + $0x90] sm:$0xff]
            %v520 = vld [vmem:[#allocation2 + $0xa8] sm:$0xff]
            %v521 = vld [vmem:[#allocation2 + $0xc0] sm:$0xff]
            %v522 = vld [vmem:[#allocation2 + $0xd8] sm:$0xff]
            %v523 = vld [vmem:[#allocation2 + $0xf0] sm:$0xff]
            %v524 = vld [vmem:[#allocation2 + $0x108] sm:$0xff]
            %v525 = vld [vmem:[#allocation2 + $0x120] sm:$0xff]
            %v526 = vld [vmem:[#allocation2 + $0x138] sm:$0xff]
            %v527 = vld [vmem:[#allocation2 + $0x150] sm:$0xff]
            %v528 = vld [vmem:[#allocation2 + $0x168] sm:$0xff]
            %v529 = vld [vmem:[%s237] sm:$0xf]
            %v530 = vld [vmem:[%s237 + $0x4] sm:$0xf]
            %v531 = vld [vmem:[%s237 + $0x8] sm:$0xf]
            %v532 = vld [vmem:[%s237 + $0xc] sm:$0xf]
            %v533 = vld [vmem:[%s237 + $0x10] sm:$0xf]
            %v534 = vld [vmem:[%s237 + $0x14] sm:$0xf]
            %v535 = vld [vmem:[%s237 + $0x18] sm:$0xf]
            %v536 = vld [vmem:[%s237 + $0x1c] sm:$0xf]
            %v537 = vld [vmem:[%s237 + $0x20] sm:$0xf]
            %v538 = vld [vmem:[%s237 + $0x24] sm:$0xf]
            %v539 = vld [vmem:[%s237 + $0x28] sm:$0xf]
            %v540 = vld [vmem:[%s237 + $0x2c] sm:$0xf]
            %v541 = vld [vmem:[%s237 + $0x30] sm:$0xf]
            %v542 = vld [vmem:[%s237 + $0x34] sm:$0xf]
            %v543 = vld [vmem:[%s237 + $0x38] sm:$0xf]
            %v544 = vld [vmem:[%s237 + $0x3c] sm:$0xf]
            %v561 = vunpack.c.l.b16 %v529
            %v562 = vunpack.c.l.b16 %v530
            %v563 = vunpack.c.l.b16 %v531
            %v564 = vunpack.c.l.b16 %v532
            %v565 = vunpack.c.l.b16 %v533
            %v566 = vunpack.c.l.b16 %v534
            %v567 = vunpack.c.l.b16 %v535
            %v568 = vunpack.c.l.b16 %v536
            %v569 = vunpack.c.l.b16 %v537
            %v570 = vunpack.c.l.b16 %v538
            %v571 = vunpack.c.l.b16 %v539
            %v572 = vunpack.c.l.b16 %v540
            %v573 = vunpack.c.l.b16 %v541
            %v574 = vunpack.c.l.b16 %v542
            %v575 = vunpack.c.l.b16 %v543
            %v576 = vunpack.c.l.b16 %v544
            %v577 = vpack.c.b16 %v562, %v561
            %v578 = vpack.c.b16 %v564, %v563
            %v579 = vpack.c.b16 %v566, %v565
            %v580 = vpack.c.b16 %v568, %v567
            %v581 = vpack.c.b16 %v570, %v569
            %v582 = vpack.c.b16 %v572, %v571
            %v583 = vpack.c.b16 %v574, %v573
            %v584 = vpack.c.b16 %v576, %v575
            %593 = vmatprep.subr.bf16.mxu0 0
            %594 = vmatpush1.bf16.msra.mxu0 %v577
            %595 = vmatprep.subr.bf16.mxu0 0
            %596 = vmatpush1.bf16.msra.mxu0 %v578
            %597 = vmatprep.subr.bf16.mxu0 0
            %598 = vmatpush1.bf16.msra.mxu0 %v579
            %599 = vmatprep.subr.bf16.mxu0 0
            %600 = vmatpush1.bf16.msra.mxu0 %v580
            %601 = vmatprep.subr.bf16.mxu0 0
            %602 = vmatpush1.bf16.msra.mxu0 %v581
            %603 = vmatprep.subr.bf16.mxu0 0
            %604 = vmatpush1.bf16.msra.mxu0 %v582
            %605 = vmatprep.subr.bf16.mxu0 0
            %606 = vmatpush1.bf16.msra.mxu0 %v583
            %607 = vmatprep.subr.bf16.mxu0 0
            %608 = vmatpush1.bf16.msra.mxu0 %v584
            %609 = vmatprep.subr.bf16.mxu0 0
            %610 = vmatpush1.bf16.msra.mxu0 0
            %611 = vmatprep.subr.bf16.mxu0 0
            %612 = vmatpush1.bf16.msra.mxu0 0
            %613 = vmatprep.subr.bf16.mxu0 0
            %614 = vmatpush1.bf16.msra.mxu0 0
            %615 = vmatprep.subr.bf16.mxu0 0
            %616 = vmatpush1.bf16.msra.mxu0 0
            %617 = vmatprep.subr.bf16.mxu0 0
            %618 = vmatpush1.bf16.msra.mxu0 0
            %619 = vmatprep.subr.bf16.mxu0 0
            %620 = vmatpush1.bf16.msra.mxu0 0
            %621 = vmatprep.subr.bf16.mxu0 0
            %622 = vmatpush1.bf16.msra.mxu0 0
            %623 = vmatprep.subr.bf16.mxu0 0
            %624 = vmatpush1.bf16.msra.mxu0 0
            %625 = vmatprep.mubr.bf16.mxu0 0
            %626 = vmatmul.mubr.bf16.gmra.mrb[0].mxu0 %v513
            %v627 = vpop.f32.mrb[0].mxu0
            %v628 = vadd.f32 0.0, %v627
            %v629 = vpop.f32.mrb[0].mxu0
            %v630 = vpop.f32.mrb[0].mxu0
            %v631 = vadd.f32 0.0, %v630
            %v632 = vpop.f32.mrb[0].mxu0
            %633 = vmatprep.mubr.bf16.mxu0 0
            %634 = vmatmul.mubr.bf16.gmra.mrb[0].mxu0 %v514
            %v635 = vpop.f32.mrb[0].mxu0
            %v636 = vadd.f32 0.0, %v635
            %v637 = vpop.f32.mrb[0].mxu0
            %v638 = vpop.f32.mrb[0].mxu0
            %v639 = vadd.f32 0.0, %v638
            %v640 = vpop.f32.mrb[0].mxu0
            %641 = vmatprep.mubr.bf16.mxu0 0
            %642 = vmatmul.mubr.bf16.gmra.mrb[0].mxu0 %v515
            %v643 = vpop.f32.mrb[0].mxu0
            %v644 = vadd.f32 0.0, %v643
            %v645 = vpop.f32.mrb[0].mxu0
            %v646 = vpop.f32.mrb[0].mxu0
            %v647 = vadd.f32 0.0, %v646
            %v648 = vpop.f32.mrb[0].mxu0
            %649 = vmatprep.mubr.bf16.mxu0 0
            %650 = vmatmul.mubr.bf16.gmra.mrb[0].mxu0 %v516
            %v651 = vpop.f32.mrb[0].mxu0
            %v652 = vadd.f32 0.0, %v651
            %v653 = vpop.f32.mrb[0].mxu0
            %v654 = vpop.f32.mrb[0].mxu0
            %v655 = vadd.f32 0.0, %v654
            %v656 = vpop.f32.mrb[0].mxu0
            %657 = vmatprep.mubr.bf16.mxu0 0
            %658 = vmatmul.mubr.bf16.gmra.mrb[0].mxu0 %v517
            %v659 = vpop.f32.mrb[0].mxu0
            %v660 = vadd.f32 0.0, %v659
            %v661 = vpop.f32.mrb[0].mxu0
            %v662 = vpop.f32.mrb[0].mxu0
            %v663 = vadd.f32 0.0, %v662
            %v664 = vpop.f32.mrb[0].mxu0
            %665 = vmatprep.mubr.bf16.mxu0 0
            %666 = vmatmul.mubr.bf16.gmra.mrb[0].mxu0 %v518
            %v667 = vpop.f32.mrb[0].mxu0
            %v668 = vadd.f32 0.0, %v667
            %v669 = vpop.f32.mrb[0].mxu0
            %v670 = vpop.f32.mrb[0].mxu0
            %v671 = vadd.f32 0.0, %v670
            %v672 = vpop.f32.mrb[0].mxu0
            %673 = vmatprep.mubr.bf16.mxu0 0
            %674 = vmatmul.mubr.bf16.gmra.mrb[0].mxu0 %v519
            %v675 = vpop.f32.mrb[0].mxu0
            %v676 = vadd.f32 0.0, %v675
            %v677 = vpop.f32.mrb[0].mxu0
            %v678 = vpop.f32.mrb[0].mxu0
            %v679 = vadd.f32 0.0, %v678
            %v680 = vpop.f32.mrb[0].mxu0
            %681 = vmatprep.mubr.bf16.mxu0 0
            %682 = vmatmul.mubr.bf16.gmra.mrb[0].mxu0 %v520
            %v683 = vpop.f32.mrb[0].mxu0
            %v684 = vadd.f32 0.0, %v683
            %v685 = vpop.f32.mrb[0].mxu0
            %v686 = vpop.f32.mrb[0].mxu0
            %v687 = vadd.f32 0.0, %v686
            %v688 = vpop.f32.mrb[0].mxu0
            %689 = vmatprep.mubr.bf16.mxu0 0
            %690 = vmatmul.mubr.bf16.gmra.mrb[0].mxu0 %v521
            %v691 = vpop.f32.mrb[0].mxu0
            %v692 = vadd.f32 0.0, %v691
            %v693 = vpop.f32.mrb[0].mxu0
            %v694 = vpop.f32.mrb[0].mxu0
            %v695 = vadd.f32 0.0, %v694
            %v696 = vpop.f32.mrb[0].mxu0
            %697 = vmatprep.mubr.bf16.mxu0 0
            %698 = vmatmul.mubr.bf16.gmra.mrb[0].mxu0 %v522
            %v699 = vpop.f32.mrb[0].mxu0
            %v700 = vadd.f32 0.0, %v699
            %v701 = vpop.f32.mrb[0].mxu0
            %v702 = vpop.f32.mrb[0].mxu0
            %v703 = vadd.f32 0.0, %v702
            %v704 = vpop.f32.mrb[0].mxu0
            %705 = vmatprep.mubr.bf16.mxu0 0
            %706 = vmatmul.mubr.bf16.gmra.mrb[0].mxu0 %v523
            %v707 = vpop.f32.mrb[0].mxu0
            %v708 = vadd.f32 0.0, %v707
            %v709 = vpop.f32.mrb[0].mxu0
            %v710 = vpop.f32.mrb[0].mxu0
            %v711 = vadd.f32 0.0, %v710
            %v712 = vpop.f32.mrb[0].mxu0
            %713 = vmatprep.mubr.bf16.mxu0 0
            %714 = vmatmul.mubr.bf16.gmra.mrb[0].mxu0 %v524
            %v715 = vpop.f32.mrb[0].mxu0
            %v716 = vadd.f32 0.0, %v715
            %v717 = vpop.f32.mrb[0].mxu0
            %v718 = vpop.f32.mrb[0].mxu0
            %v719 = vadd.f32 0.0, %v718
            %v720 = vpop.f32.mrb[0].mxu0
            %721 = vmatprep.mubr.bf16.mxu0 0
            %722 = vmatmul.mubr.bf16.gmra.mrb[0].mxu0 %v525
            %v723 = vpop.f32.mrb[0].mxu0
            %v724 = vadd.f32 0.0, %v723
            %v725 = vpop.f32.mrb[0].mxu0
            %v726 = vpop.f32.mrb[0].mxu0
            %v727 = vadd.f32 0.0, %v726
            %v728 = vpop.f32.mrb[0].mxu0
            %729 = vmatprep.mubr.bf16.mxu0 0
            %730 = vmatmul.mubr.bf16.gmra.mrb[0].mxu0 %v526
            %v731 = vpop.f32.mrb[0].mxu0
            %v732 = vadd.f32 0.0, %v731
            %v733 = vpop.f32.mrb[0].mxu0
            %v734 = vpop.f32.mrb[0].mxu0
            %v735 = vadd.f32 0.0, %v734
            %v736 = vpop.f32.mrb[0].mxu0
            %737 = vmatprep.mubr.bf16.mxu0 0
            %738 = vmatmul.mubr.bf16.gmra.mrb[0].mxu0 %v527
            %v739 = vpop.f32.mrb[0].mxu0
            %v740 = vadd.f32 0.0, %v739
            %v741 = vpop.f32.mrb[0].mxu0
            %v742 = vpop.f32.mrb[0].mxu0
            %v743 = vadd.f32 0.0, %v742
            %v744 = vpop.f32.mrb[0].mxu0
            %745 = vmatprep.mubr.bf16.mxu0 0
            %746 = vmatmul.mubr.bf16.gmra.mrb[0].mxu0 %v528
            %v747 = vpop.f32.mrb[0].mxu0
            %v748 = vadd.f32 0.0, %v747
            %v749 = vpop.f32.mrb[0].mxu0
            %v750 = vpop.f32.mrb[0].mxu0
            %v751 = vadd.f32 0.0, %v750
            %v752 = vpop.f32.mrb[0].mxu0
            %753 = vdwg.mxu0
            %v754 = vpack.c.bf16 %v631, %v628
            %v755 = vpack.c.bf16 %v639, %v636
            %v756 = vpack.c.bf16 %v647, %v644
            %v757 = vpack.c.bf16 %v655, %v652
            %v758 = vpack.c.bf16 %v663, %v660
            %v759 = vpack.c.bf16 %v671, %v668
            %v760 = vpack.c.bf16 %v679, %v676
            %v761 = vpack.c.bf16 %v687, %v684
            %v762 = vpack.c.bf16 %v695, %v692
            %v763 = vpack.c.bf16 %v703, %v700
            %v764 = vpack.c.bf16 %v711, %v708
            %v765 = vpack.c.bf16 %v719, %v716
            %v766 = vpack.c.bf16 %v727, %v724
            %v767 = vpack.c.bf16 %v735, %v732
            %v768 = vpack.c.bf16 %v743, %v740
            %v769 = vpack.c.bf16 %v751, %v748
            %770 = vst [vmem:[#allocation3] sm:$0xff] %v754
            %771 = vst [vmem:[#allocation3 + $0x8] sm:$0xff] %v755
            %772 = vst [vmem:[#allocation3 + $0x10] sm:$0xff] %v756
            %773 = vst [vmem:[#allocation3 + $0x18] sm:$0xff] %v757
            %774 = vst [vmem:[#allocation3 + $0x20] sm:$0xff] %v758
            %775 = vst [vmem:[#allocation3 + $0x28] sm:$0xff] %v759
            %776 = vst [vmem:[#allocation3 + $0x30] sm:$0xff] %v760
            %777 = vst [vmem:[#allocation3 + $0x38] sm:$0xff] %v761
            %778 = vst [vmem:[#allocation3 + $0x40] sm:$0xff] %v762
            %779 = vst [vmem:[#allocation3 + $0x48] sm:$0xff] %v763
            %780 = vst [vmem:[#allocation3 + $0x50] sm:$0xff] %v764
            %781 = vst [vmem:[#allocation3 + $0x58] sm:$0xff] %v765
            %782 = vst [vmem:[#allocation3 + $0x60] sm:$0xff] %v766
            %783 = vst [vmem:[#allocation3 + $0x68] sm:$0xff] %v767
            %784 = vst [vmem:[#allocation3 + $0x70] sm:$0xff] %v768
            %785 = vst [vmem:[#allocation3 + $0x78] sm:$0xff] %v769
          $region60: #{tpu_custom_call.1} parent=55 // pred_fallthru
            _
          %p786 = scmp.eq.s32.totalorder %s27, 1
          // Predicated region
          $region61: #{tpu_custom_call.1} parent=55 // pred_check
            %p787 = pneg %p786
          $region62: #{tpu_custom_call.1} parent=55 // pred_check_branch
            %789 = sbr.rel (%p787) target = $region64
          $region63: #{tpu_custom_call.1} parent=55 // pred_region
            %v790 = vld [vmem:[#allocation2 + $0x8] sm:$0xff]
            %v791 = vld [vmem:[#allocation2 + $0x20] sm:$0xff]
            %v792 = vld [vmem:[#allocation2 + $0x38] sm:$0xff]
            %v793 = vld [vmem:[#allocation2 + $0x50] sm:$0xff]
            %v794 = vld [vmem:[#allocation2 + $0x68] sm:$0xff]
            %v795 = vld [vmem:[#allocation2 + $0x80] sm:$0xff]
            %v796 = vld [vmem:[#allocation2 + $0x98] sm:$0xff]
            %v797 = vld [vmem:[#allocation2 + $0xb0] sm:$0xff]
            %v798 = vld [vmem:[#allocation2 + $0xc8] sm:$0xff]
            %v799 = vld [vmem:[#allocation2 + $0xe0] sm:$0xff]
            %v800 = vld [vmem:[#allocation2 + $0xf8] sm:$0xff]
            %v801 = vld [vmem:[#allocation2 + $0x110] sm:$0xff]
            %v802 = vld [vmem:[#allocation2 + $0x128] sm:$0xff]
            %v803 = vld [vmem:[#allocation2 + $0x140] sm:$0xff]
            %v804 = vld [vmem:[#allocation2 + $0x158] sm:$0xff]
            %v805 = vld [vmem:[#allocation2 + $0x170] sm:$0xff]
            %v806 = vld [vmem:[%s237] sm:$0xf]
            %v807 = vld [vmem:[%s237 + $0x4] sm:$0xf]
            %v808 = vld [vmem:[%s237 + $0x8] sm:$0xf]
            %v809 = vld [vmem:[%s237 + $0xc] sm:$0xf]
            %v810 = vld [vmem:[%s237 + $0x10] sm:$0xf]
            %v811 = vld [vmem:[%s237 + $0x14] sm:$0xf]
            %v812 = vld [vmem:[%s237 + $0x18] sm:$0xf]
            %v813 = vld [vmem:[%s237 + $0x1c] sm:$0xf]
            %v814 = vld [vmem:[%s237 + $0x20] sm:$0xf]
            %v815 = vld [vmem:[%s237 + $0x24] sm:$0xf]
            %v816 = vld [vmem:[%s237 + $0x28] sm:$0xf]
            %v817 = vld [vmem:[%s237 + $0x2c] sm:$0xf]
            %v818 = vld [vmem:[%s237 + $0x30] sm:$0xf]
            %v819 = vld [vmem:[%s237 + $0x34] sm:$0xf]
            %v820 = vld [vmem:[%s237 + $0x38] sm:$0xf]
            %v821 = vld [vmem:[%s237 + $0x3c] sm:$0xf]
            %v838 = vunpack.c.l.b16 %v806
            %v839 = vunpack.c.l.b16 %v807
            %v840 = vunpack.c.l.b16 %v808
            %v841 = vunpack.c.l.b16 %v809
            %v842 = vunpack.c.l.b16 %v810
            %v843 = vunpack.c.l.b16 %v811
            %v844 = vunpack.c.l.b16 %v812
            %v845 = vunpack.c.l.b16 %v813
            %v846 = vunpack.c.l.b16 %v814
            %v847 = vunpack.c.l.b16 %v815
            %v848 = vunpack.c.l.b16 %v816
            %v849 = vunpack.c.l.b16 %v817
            %v850 = vunpack.c.l.b16 %v818
            %v851 = vunpack.c.l.b16 %v819
            %v852 = vunpack.c.l.b16 %v820
            %v853 = vunpack.c.l.b16 %v821
            %v854 = vpack.c.b16 %v839, %v838
            %v855 = vpack.c.b16 %v841, %v840
            %v856 = vpack.c.b16 %v843, %v842
            %v857 = vpack.c.b16 %v845, %v844
            %v858 = vpack.c.b16 %v847, %v846
            %v859 = vpack.c.b16 %v849, %v848
            %v860 = vpack.c.b16 %v851, %v850
            %v861 = vpack.c.b16 %v853, %v852
            %870 = vmatprep.subr.bf16.mxu0 0
            %871 = vmatpush1.bf16.msra.mxu0 %v854
            %872 = vmatprep.subr.bf16.mxu0 0
            %873 = vmatpush1.bf16.msra.mxu0 %v855
            %874 = vmatprep.subr.bf16.mxu0 0
            %875 = vmatpush1.bf16.msra.mxu0 %v856
            %876 = vmatprep.subr.bf16.mxu0 0
            %877 = vmatpush1.bf16.msra.mxu0 %v857
            %878 = vmatprep.subr.bf16.mxu0 0
            %879 = vmatpush1.bf16.msra.mxu0 %v858
            %880 = vmatprep.subr.bf16.mxu0 0
            %881 = vmatpush1.bf16.msra.mxu0 %v859
            %882 = vmatprep.subr.bf16.mxu0 0
            %883 = vmatpush1.bf16.msra.mxu0 %v860
            %884 = vmatprep.subr.bf16.mxu0 0
            %885 = vmatpush1.bf16.msra.mxu0 %v861
            %886 = vmatprep.subr.bf16.mxu0 0
            %887 = vmatpush1.bf16.msra.mxu0 0
            %888 = vmatprep.subr.bf16.mxu0 0
            %889 = vmatpush1.bf16.msra.mxu0 0
            %890 = vmatprep.subr.bf16.mxu0 0
            %891 = vmatpush1.bf16.msra.mxu0 0
            %892 = vmatprep.subr.bf16.mxu0 0
            %893 = vmatpush1.bf16.msra.mxu0 0
            %894 = vmatprep.subr.bf16.mxu0 0
            %895 = vmatpush1.bf16.msra.mxu0 0
            %896 = vmatprep.subr.bf16.mxu0 0
            %897 = vmatpush1.bf16.msra.mxu0 0
            %898 = vmatprep.subr.bf16.mxu0 0
            %899 = vmatpush1.bf16.msra.mxu0 0
            %900 = vmatprep.subr.bf16.mxu0 0
            %901 = vmatpush1.bf16.msra.mxu0 0
            %902 = vmatprep.mubr.bf16.mxu0 0
            %903 = vmatmul.mubr.bf16.gmra.mrb[0].mxu0 %v790
            %v904 = vpop.f32.mrb[0].mxu0
            %v905 = vadd.f32 0.0, %v904
            %v906 = vpop.f32.mrb[0].mxu0
            %v907 = vpop.f32.mrb[0].mxu0
            %v908 = vadd.f32 0.0, %v907
            %v909 = vpop.f32.mrb[0].mxu0
            %910 = vmatprep.mubr.bf16.mxu0 0
            %911 = vmatmul.mubr.bf16.gmra.mrb[0].mxu0 %v791
            %v912 = vpop.f32.mrb[0].mxu0
            %v913 = vadd.f32 0.0, %v912
            %v914 = vpop.f32.mrb[0].mxu0
            %v915 = vpop.f32.mrb[0].mxu0
            %v916 = vadd.f32 0.0, %v915
            %v917 = vpop.f32.mrb[0].mxu0
            %918 = vmatprep.mubr.bf16.mxu0 0
            %919 = vmatmul.mubr.bf16.gmra.mrb[0].mxu0 %v792
            %v920 = vpop.f32.mrb[0].mxu0
            %v921 = vadd.f32 0.0, %v920
            %v922 = vpop.f32.mrb[0].mxu0
            %v923 = vpop.f32.mrb[0].mxu0
            %v924 = vadd.f32 0.0, %v923
            %v925 = vpop.f32.mrb[0].mxu0
            %926 = vmatprep.mubr.bf16.mxu0 0
            %927 = vmatmul.mubr.bf16.gmra.mrb[0].mxu0 %v793
            %v928 = vpop.f32.mrb[0].mxu0
            %v929 = vadd.f32 0.0, %v928
            %v930 = vpop.f32.mrb[0].mxu0
            %v931 = vpop.f32.mrb[0].mxu0
            %v932 = vadd.f32 0.0, %v931
            %v933 = vpop.f32.mrb[0].mxu0
            %934 = vmatprep.mubr.bf16.mxu0 0
            %935 = vmatmul.mubr.bf16.gmra.mrb[0].mxu0 %v794
            %v936 = vpop.f32.mrb[0].mxu0
            %v937 = vadd.f32 0.0, %v936
            %v938 = vpop.f32.mrb[0].mxu0
            %v939 = vpop.f32.mrb[0].mxu0
            %v940 = vadd.f32 0.0, %v939
            %v941 = vpop.f32.mrb[0].mxu0
            %942 = vmatprep.mubr.bf16.mxu0 0
            %943 = vmatmul.mubr.bf16.gmra.mrb[0].mxu0 %v795
            %v944 = vpop.f32.mrb[0].mxu0
            %v945 = vadd.f32 0.0, %v944
            %v946 = vpop.f32.mrb[0].mxu0
            %v947 = vpop.f32.mrb[0].mxu0
            %v948 = vadd.f32 0.0, %v947
            %v949 = vpop.f32.mrb[0].mxu0
            %950 = vmatprep.mubr.bf16.mxu0 0
            %951 = vmatmul.mubr.bf16.gmra.mrb[0].mxu0 %v796
            %v952 = vpop.f32.mrb[0].mxu0
            %v953 = vadd.f32 0.0, %v952
            %v954 = vpop.f32.mrb[0].mxu0
            %v955 = vpop.f32.mrb[0].mxu0
            %v956 = vadd.f32 0.0, %v955
            %v957 = vpop.f32.mrb[0].mxu0
            %958 = vmatprep.mubr.bf16.mxu0 0
            %959 = vmatmul.mubr.bf16.gmra.mrb[0].mxu0 %v797
            %v960 = vpop.f32.mrb[0].mxu0
            %v961 = vadd.f32 0.0, %v960
            %v962 = vpop.f32.mrb[0].mxu0
            %v963 = vpop.f32.mrb[0].mxu0
            %v964 = vadd.f32 0.0, %v963
            %v965 = vpop.f32.mrb[0].mxu0
            %966 = vmatprep.mubr.bf16.mxu0 0
            %967 = vmatmul.mubr.bf16.gmra.mrb[0].mxu0 %v798
            %v968 = vpop.f32.mrb[0].mxu0
            %v969 = vadd.f32 0.0, %v968
            %v970 = vpop.f32.mrb[0].mxu0
            %v971 = vpop.f32.mrb[0].mxu0
            %v972 = vadd.f32 0.0, %v971
            %v973 = vpop.f32.mrb[0].mxu0
            %974 = vmatprep.mubr.bf16.mxu0 0
            %975 = vmatmul.mubr.bf16.gmra.mrb[0].mxu0 %v799
            %v976 = vpop.f32.mrb[0].mxu0
            %v977 = vadd.f32 0.0, %v976
            %v978 = vpop.f32.mrb[0].mxu0
            %v979 = vpop.f32.mrb[0].mxu0
            %v980 = vadd.f32 0.0, %v979
            %v981 = vpop.f32.mrb[0].mxu0
            %982 = vmatprep.mubr.bf16.mxu0 0
            %983 = vmatmul.mubr.bf16.gmra.mrb[0].mxu0 %v800
            %v984 = vpop.f32.mrb[0].mxu0
            %v985 = vadd.f32 0.0, %v984
            %v986 = vpop.f32.mrb[0].mxu0
            %v987 = vpop.f32.mrb[0].mxu0
            %v988 = vadd.f32 0.0, %v987
            %v989 = vpop.f32.mrb[0].mxu0
            %990 = vmatprep.mubr.bf16.mxu0 0
            %991 = vmatmul.mubr.bf16.gmra.mrb[0].mxu0 %v801
            %v992 = vpop.f32.mrb[0].mxu0
            %v993 = vadd.f32 0.0, %v992
            %v994 = vpop.f32.mrb[0].mxu0
            %v995 = vpop.f32.mrb[0].mxu0
            %v996 = vadd.f32 0.0, %v995
            %v997 = vpop.f32.mrb[0].mxu0
            %998 = vmatprep.mubr.bf16.mxu0 0
            %999 = vmatmul.mubr.bf16.gmra.mrb[0].mxu0 %v802
            %v1000 = vpop.f32.mrb[0].mxu0
            %v1001 = vadd.f32 0.0, %v1000
            %v1002 = vpop.f32.mrb[0].mxu0
            %v1003 = vpop.f32.mrb[0].mxu0
            %v1004 = vadd.f32 0.0, %v1003
            %v1005 = vpop.f32.mrb[0].mxu0
            %1006 = vmatprep.mubr.bf16.mxu0 0
            %1007 = vmatmul.mubr.bf16.gmra.mrb[0].mxu0 %v803
            %v1008 = vpop.f32.mrb[0].mxu0
            %v1009 = vadd.f32 0.0, %v1008
            %v1010 = vpop.f32.mrb[0].mxu0
            %v1011 = vpop.f32.mrb[0].mxu0
            %v1012 = vadd.f32 0.0, %v1011
            %v1013 = vpop.f32.mrb[0].mxu0
            %1014 = vmatprep.mubr.bf16.mxu0 0
            %1015 = vmatmul.mubr.bf16.gmra.mrb[0].mxu0 %v804
            %v1016 = vpop.f32.mrb[0].mxu0
            %v1017 = vadd.f32 0.0, %v1016
            %v1018 = vpop.f32.mrb[0].mxu0
            %v1019 = vpop.f32.mrb[0].mxu0
            %v1020 = vadd.f32 0.0, %v1019
            %v1021 = vpop.f32.mrb[0].mxu0
            %1022 = vmatprep.mubr.bf16.mxu0 0
            %1023 = vmatmul.mubr.bf16.gmra.mrb[0].mxu0 %v805
            %v1024 = vpop.f32.mrb[0].mxu0
            %v1025 = vadd.f32 0.0, %v1024
            %v1026 = vpop.f32.mrb[0].mxu0
            %v1027 = vpop.f32.mrb[0].mxu0
            %v1028 = vadd.f32 0.0, %v1027
            %v1029 = vpop.f32.mrb[0].mxu0
            %1030 = vdwg.mxu0
            %v1031 = vpack.c.bf16 %v908, %v905
            %v1032 = vpack.c.bf16 %v916, %v913
            %v1033 = vpack.c.bf16 %v924, %v921
            %v1034 = vpack.c.bf16 %v932, %v929
            %v1035 = vpack.c.bf16 %v940, %v937
            %v1036 = vpack.c.bf16 %v948, %v945
            %v1037 = vpack.c.bf16 %v956, %v953
            %v1038 = vpack.c.bf16 %v964, %v961
            %v1039 = vpack.c.bf16 %v972, %v969
            %v1040 = vpack.c.bf16 %v980, %v977
            %v1041 = vpack.c.bf16 %v988, %v985
            %v1042 = vpack.c.bf16 %v996, %v993
            %v1043 = vpack.c.bf16 %v1004, %v1001
            %v1044 = vpack.c.bf16 %v1012, %v1009
            %v1045 = vpack.c.bf16 %v1020, %v1017
            %v1046 = vpack.c.bf16 %v1028, %v1025
            %1047 = vst [vmem:[#allocation3] sm:$0xff] %v1031
            %1048 = vst [vmem:[#allocation3 + $0x8] sm:$0xff] %v1032
            %1049 = vst [vmem:[#allocation3 + $0x10] sm:$0xff] %v1033
            %1050 = vst [vmem:[#allocation3 + $0x18] sm:$0xff] %v1034
            %1051 = vst [vmem:[#allocation3 + $0x20] sm:$0xff] %v1035
            %1052 = vst [vmem:[#allocation3 + $0x28] sm:$0xff] %v1036
            %1053 = vst [vmem:[#allocation3 + $0x30] sm:$0xff] %v1037
            %1054 = vst [vmem:[#allocation3 + $0x38] sm:$0xff] %v1038
            %1055 = vst [vmem:[#allocation3 + $0x40] sm:$0xff] %v1039
            %1056 = vst [vmem:[#allocation3 + $0x48] sm:$0xff] %v1040
            %1057 = vst [vmem:[#allocation3 + $0x50] sm:$0xff] %v1041
            %1058 = vst [vmem:[#allocation3 + $0x58] sm:$0xff] %v1042
            %1059 = vst [vmem:[#allocation3 + $0x60] sm:$0xff] %v1043
            %1060 = vst [vmem:[#allocation3 + $0x68] sm:$0xff] %v1044
            %1061 = vst [vmem:[#allocation3 + $0x70] sm:$0xff] %v1045
            %1062 = vst [vmem:[#allocation3 + $0x78] sm:$0xff] %v1046
          $region64: #{tpu_custom_call.1} parent=55 // pred_fallthru
            _
          %p1063 = scmp.eq.s32.totalorder %s27, 2
          // Predicated region
          $region65: #{tpu_custom_call.1} parent=55 // pred_check
            %p1064 = pneg %p1063
          $region66: #{tpu_custom_call.1} parent=55 // pred_check_branch
            %1066 = sbr.rel (%p1064) target = $region68
          $region67: #{tpu_custom_call.1} parent=55 // pred_region
            %v1067 = vld [vmem:[#allocation2] sm:$0xff]
            %v1068 = vld [vmem:[#allocation2 + $0x8] sm:$0xff]
            %v1069 = vld [vmem:[#allocation2 + $0x10] sm:$0xff]
            %v1070 = vld [vmem:[#allocation2 + $0x18] sm:$0xff]
            %v1071 = vld [vmem:[#allocation2 + $0x20] sm:$0xff]
            %v1072 = vld [vmem:[#allocation2 + $0x28] sm:$0xff]
            %v1073 = vld [vmem:[#allocation2 + $0x30] sm:$0xff]
            %v1074 = vld [vmem:[#allocation2 + $0x38] sm:$0xff]
            %v1075 = vld [vmem:[#allocation2 + $0x40] sm:$0xff]
            %v1076 = vld [vmem:[#allocation2 + $0x48] sm:$0xff]
            %v1077 = vld [vmem:[#allocation2 + $0x50] sm:$0xff]
            %v1078 = vld [vmem:[#allocation2 + $0x58] sm:$0xff]
            %v1079 = vld [vmem:[#allocation2 + $0x60] sm:$0xff]
            %v1080 = vld [vmem:[#allocation2 + $0x68] sm:$0xff]
            %v1081 = vld [vmem:[#allocation2 + $0x70] sm:$0xff]
            %v1082 = vld [vmem:[#allocation2 + $0x78] sm:$0xff]
            %v1083 = vld [vmem:[#allocation2 + $0x80] sm:$0xff]
            %v1084 = vld [vmem:[#allocation2 + $0x88] sm:$0xff]
            %v1085 = vld [vmem:[#allocation2 + $0x90] sm:$0xff]
            %v1086 = vld [vmem:[#allocation2 + $0x98] sm:$0xff]
            %v1087 = vld [vmem:[#allocation2 + $0xa0] sm:$0xff]
            %v1088 = vld [vmem:[#allocation2 + $0xa8] sm:$0xff]
            %v1089 = vld [vmem:[#allocation2 + $0xb0] sm:$0xff]
            %v1090 = vld [vmem:[#allocation2 + $0xb8] sm:$0xff]
            %v1091 = vld [vmem:[#allocation2 + $0xc0] sm:$0xff]
            %v1092 = vld [vmem:[#allocation2 + $0xc8] sm:$0xff]
            %v1093 = vld [vmem:[#allocation2 + $0xd0] sm:$0xff]
            %v1094 = vld [vmem:[#allocation2 + $0xd8] sm:$0xff]
            %v1095 = vld [vmem:[#allocation2 + $0xe0] sm:$0xff]
            %v1096 = vld [vmem:[#allocation2 + $0xe8] sm:$0xff]
            %v1097 = vld [vmem:[#allocation2 + $0xf0] sm:$0xff]
            %v1098 = vld [vmem:[#allocation2 + $0xf8] sm:$0xff]
            %v1099 = vld [vmem:[#allocation2 + $0x100] sm:$0xff]
            %v1100 = vld [vmem:[#allocation2 + $0x108] sm:$0xff]
            %v1101 = vld [vmem:[#allocation2 + $0x110] sm:$0xff]
            %v1102 = vld [vmem:[#allocation2 + $0x118] sm:$0xff]
            %v1103 = vld [vmem:[#allocation2 + $0x120] sm:$0xff]
            %v1104 = vld [vmem:[#allocation2 + $0x128] sm:$0xff]
            %v1105 = vld [vmem:[#allocation2 + $0x130] sm:$0xff]
            %v1106 = vld [vmem:[#allocation2 + $0x138] sm:$0xff]
            %v1107 = vld [vmem:[#allocation2 + $0x140] sm:$0xff]
            %v1108 = vld [vmem:[#allocation2 + $0x148] sm:$0xff]
            %v1109 = vld [vmem:[#allocation2 + $0x150] sm:$0xff]
            %v1110 = vld [vmem:[#allocation2 + $0x158] sm:$0xff]
            %v1111 = vld [vmem:[#allocation2 + $0x160] sm:$0xff]
            %v1112 = vld [vmem:[#allocation2 + $0x168] sm:$0xff]
            %v1113 = vld [vmem:[#allocation2 + $0x170] sm:$0xff]
            %v1114 = vld [vmem:[#allocation2 + $0x178] sm:$0xff]
            %v1115 = vld [vmem:[#allocation11] sm:$0xf]
            %v1116 = vld [vmem:[#allocation11 + $0x4] sm:$0xf]
            %v1117 = vld [vmem:[#allocation11 + $0x8] sm:$0xf]
            %v1118 = vld [vmem:[#allocation11 + $0xc] sm:$0xf]
            %v1119 = vld [vmem:[#allocation11 + $0x10] sm:$0xf]
            %v1120 = vld [vmem:[#allocation11 + $0x14] sm:$0xf]
            %v1121 = vld [vmem:[#allocation11 + $0x18] sm:$0xf]
            %v1122 = vld [vmem:[#allocation11 + $0x1c] sm:$0xf]
            %v1123 = vld [vmem:[#allocation11 + $0x20] sm:$0xf]
            %v1124 = vld [vmem:[#allocation11 + $0x24] sm:$0xf]
            %v1125 = vld [vmem:[#allocation11 + $0x28] sm:$0xf]
            %v1126 = vld [vmem:[#allocation11 + $0x2c] sm:$0xf]
            %v1127 = vld [vmem:[#allocation11 + $0x30] sm:$0xf]
            %v1128 = vld [vmem:[#allocation11 + $0x34] sm:$0xf]
            %v1129 = vld [vmem:[#allocation11 + $0x38] sm:$0xf]
            %v1130 = vld [vmem:[#allocation11 + $0x3c] sm:$0xf]
            %v1131 = vld [vmem:[#allocation11 + $0x40] sm:$0xf]
            %v1132 = vld [vmem:[#allocation11 + $0x44] sm:$0xf]
            %v1133 = vld [vmem:[#allocation11 + $0x48] sm:$0xf]
            %v1134 = vld [vmem:[#allocation11 + $0x4c] sm:$0xf]
            %v1135 = vld [vmem:[#allocation11 + $0x50] sm:$0xf]
            %v1136 = vld [vmem:[#allocation11 + $0x54] sm:$0xf]
            %v1137 = vld [vmem:[#allocation11 + $0x58] sm:$0xf]
            %v1138 = vld [vmem:[#allocation11 + $0x5c] sm:$0xf]
            %v1139 = vld [vmem:[#allocation11 + $0x60] sm:$0xf]
            %v1140 = vld [vmem:[#allocation11 + $0x64] sm:$0xf]
            %v1141 = vld [vmem:[#allocation11 + $0x68] sm:$0xf]
            %v1142 = vld [vmem:[#allocation11 + $0x6c] sm:$0xf]
            %v1143 = vld [vmem:[#allocation11 + $0x70] sm:$0xf]
            %v1144 = vld [vmem:[#allocation11 + $0x74] sm:$0xf]
            %v1145 = vld [vmem:[#allocation11 + $0x78] sm:$0xf]
            %v1146 = vld [vmem:[#allocation11 + $0x7c] sm:$0xf]
            %v1147 = vld [vmem:[#allocation11 + $0x80] sm:$0xf]
            %v1148 = vld [vmem:[#allocation11 + $0x84] sm:$0xf]
            %v1149 = vld [vmem:[#allocation11 + $0x88] sm:$0xf]
            %v1150 = vld [vmem:[#allocation11 + $0x8c] sm:$0xf]
            %v1151 = vld [vmem:[#allocation11 + $0x90] sm:$0xf]
            %v1152 = vld [vmem:[#allocation11 + $0x94] sm:$0xf]
            %v1153 = vld [vmem:[#allocation11 + $0x98] sm:$0xf]
            %v1154 = vld [vmem:[#allocation11 + $0x9c] sm:$0xf]
            %v1155 = vld [vmem:[#allocation11 + $0xa0] sm:$0xf]
            %v1156 = vld [vmem:[#allocation11 + $0xa4] sm:$0xf]
            %v1157 = vld [vmem:[#allocation11 + $0xa8] sm:$0xf]
            %v1158 = vld [vmem:[#allocation11 + $0xac] sm:$0xf]
            %v1159 = vld [vmem:[#allocation11 + $0xb0] sm:$0xf]
            %v1160 = vld [vmem:[#allocation11 + $0xb4] sm:$0xf]
            %v1161 = vld [vmem:[#allocation11 + $0xb8] sm:$0xf]
            %v1162 = vld [vmem:[#allocation11 + $0xbc] sm:$0xf]
            %v1211 = vunpack.c.l.b16 %v1115
            %v1212 = vunpack.c.l.b16 %v1116
            %v1213 = vunpack.c.l.b16 %v1117
            %v1214 = vunpack.c.l.b16 %v1118
            %v1215 = vunpack.c.l.b16 %v1119
            %v1216 = vunpack.c.l.b16 %v1120
            %v1217 = vunpack.c.l.b16 %v1121
            %v1218 = vunpack.c.l.b16 %v1122
            %v1219 = vunpack.c.l.b16 %v1123
            %v1220 = vunpack.c.l.b16 %v1124
            %v1221 = vunpack.c.l.b16 %v1125
            %v1222 = vunpack.c.l.b16 %v1126
            %v1223 = vunpack.c.l.b16 %v1127
            %v1224 = vunpack.c.l.b16 %v1128
            %v1225 = vunpack.c.l.b16 %v1129
            %v1226 = vunpack.c.l.b16 %v1130
            %v1227 = vunpack.c.l.b16 %v1131
            %v1228 = vunpack.c.l.b16 %v1132
            %v1229 = vunpack.c.l.b16 %v1133
            %v1230 = vunpack.c.l.b16 %v1134
            %v1231 = vunpack.c.l.b16 %v1135
            %v1232 = vunpack.c.l.b16 %v1136
            %v1233 = vunpack.c.l.b16 %v1137
            %v1234 = vunpack.c.l.b16 %v1138
            %v1235 = vunpack.c.l.b16 %v1139
            %v1236 = vunpack.c.l.b16 %v1140
            %v1237 = vunpack.c.l.b16 %v1141
            %v1238 = vunpack.c.l.b16 %v1142
            %v1239 = vunpack.c.l.b16 %v1143
            %v1240 = vunpack.c.l.b16 %v1144
            %v1241 = vunpack.c.l.b16 %v1145
            %v1242 = vunpack.c.l.b16 %v1146
            %v1243 = vunpack.c.l.b16 %v1147
            %v1244 = vunpack.c.l.b16 %v1148
            %v1245 = vunpack.c.l.b16 %v1149
            %v1246 = vunpack.c.l.b16 %v1150
            %v1247 = vunpack.c.l.b16 %v1151
            %v1248 = vunpack.c.l.b16 %v1152
            %v1249 = vunpack.c.l.b16 %v1153
            %v1250 = vunpack.c.l.b16 %v1154
            %v1251 = vunpack.c.l.b16 %v1155
            %v1252 = vunpack.c.l.b16 %v1156
            %v1253 = vunpack.c.l.b16 %v1157
            %v1254 = vunpack.c.l.b16 %v1158
            %v1255 = vunpack.c.l.b16 %v1159
            %v1256 = vunpack.c.l.b16 %v1160
            %v1257 = vunpack.c.l.b16 %v1161
            %v1258 = vunpack.c.l.b16 %v1162
            %v1259 = vpack.c.b16 %v1212, %v1211
            %v1260 = vpack.c.b16 %v1214, %v1213
            %v1261 = vpack.c.b16 %v1216, %v1215
            %v1262 = vpack.c.b16 %v1218, %v1217
            %v1263 = vpack.c.b16 %v1220, %v1219
            %v1264 = vpack.c.b16 %v1222, %v1221
            %v1265 = vpack.c.b16 %v1224, %v1223
            %v1266 = vpack.c.b16 %v1226, %v1225
            %v1267 = vpack.c.b16 %v1228, %v1227
            %v1268 = vpack.c.b16 %v1230, %v1229
            %v1269 = vpack.c.b16 %v1232, %v1231
            %v1270 = vpack.c.b16 %v1234, %v1233
            %v1271 = vpack.c.b16 %v1236, %v1235
            %v1272 = vpack.c.b16 %v1238, %v1237
            %v1273 = vpack.c.b16 %v1240, %v1239
            %v1274 = vpack.c.b16 %v1242, %v1241
            %v1275 = vpack.c.b16 %v1244, %v1243
            %v1276 = vpack.c.b16 %v1246, %v1245
            %v1277 = vpack.c.b16 %v1248, %v1247
            %v1278 = vpack.c.b16 %v1250, %v1249
            %v1279 = vpack.c.b16 %v1252, %v1251
            %v1280 = vpack.c.b16 %v1254, %v1253
            %v1281 = vpack.c.b16 %v1256, %v1255
            %v1282 = vpack.c.b16 %v1258, %v1257
            %1307 = vmatprep.subr.bf16.mxu0 0
            %1308 = vmatpush1.bf16.msra.mxu0 %v1259
            %1309 = vmatprep.subr.bf16.mxu0 0
            %1310 = vmatpush1.bf16.msra.mxu0 %v1260
            %1311 = vmatprep.subr.bf16.mxu0 0
            %1312 = vmatpush1.bf16.msra.mxu0 %v1261
            %1313 = vmatprep.subr.bf16.mxu0 0
            %1314 = vmatpush1.bf16.msra.mxu0 %v1262
            %1315 = vmatprep.subr.bf16.mxu0 0
            %1316 = vmatpush1.bf16.msra.mxu0 %v1263
            %1317 = vmatprep.subr.bf16.mxu0 0
            %1318 = vmatpush1.bf16.msra.mxu0 %v1264
            %1319 = vmatprep.subr.bf16.mxu0 0
            %1320 = vmatpush1.bf16.msra.mxu0 %v1265
            %1321 = vmatprep.subr.bf16.mxu0 0
            %1322 = vmatpush1.bf16.msra.mxu0 %v1266
            %1323 = vmatprep.subr.bf16.mxu0 0
            %1324 = vmatpush1.bf16.msra.mxu0 %v1267
            %1325 = vmatprep.subr.bf16.mxu0 0
            %1326 = vmatpush1.bf16.msra.mxu0 %v1268
            %1327 = vmatprep.subr.bf16.mxu0 0
            %1328 = vmatpush1.bf16.msra.mxu0 %v1269
            %1329 = vmatprep.subr.bf16.mxu0 0
            %1330 = vmatpush1.bf16.msra.mxu0 %v1270
            %1331 = vmatprep.subr.bf16.mxu0 0
            %1332 = vmatpush1.bf16.msra.mxu0 %v1271
            %1333 = vmatprep.subr.bf16.mxu0 0
            %1334 = vmatpush1.bf16.msra.mxu0 %v1272
            %1335 = vmatprep.subr.bf16.mxu0 0
            %1336 = vmatpush1.bf16.msra.mxu0 %v1273
            %1337 = vmatprep.subr.bf16.mxu0 0
            %1338 = vmatpush1.bf16.msra.mxu0 %v1274
            %1339 = vmatprep.mubr.bf16.mxu0 %v1068
            %1340 = vmatmul.mubr.bf16.gmra.mrb[0].mxu0 %v1067
            %v1341 = vpop.f32.mrb[0].mxu0
            %v1342 = vadd.f32 0.0, %v1341
            %v1343 = vpop.f32.mrb[0].mxu0
            %v1344 = vpop.f32.mrb[0].mxu0
            %v1345 = vadd.f32 0.0, %v1344
            %v1346 = vpop.f32.mrb[0].mxu0
            %1347 = vmatprep.mubr.bf16.mxu0 %v1071
            %1348 = vmatmul.mubr.bf16.gmra.mrb[0].mxu0 %v1070
            %v1349 = vpop.f32.mrb[0].mxu0
            %v1350 = vadd.f32 0.0, %v1349
            %v1351 = vpop.f32.mrb[0].mxu0
            %v1352 = vpop.f32.mrb[0].mxu0
            %v1353 = vadd.f32 0.0, %v1352
            %v1354 = vpop.f32.mrb[0].mxu0
            %1355 = vmatprep.mubr.bf16.mxu0 %v1074
            %1356 = vmatmul.mubr.bf16.gmra.mrb[0].mxu0 %v1073
            %v1357 = vpop.f32.mrb[0].mxu0
            %v1358 = vadd.f32 0.0, %v1357
            %v1359 = vpop.f32.mrb[0].mxu0
            %v1360 = vpop.f32.mrb[0].mxu0
            %v1361 = vadd.f32 0.0, %v1360
            %v1362 = vpop.f32.mrb[0].mxu0
            %1363 = vmatprep.mubr.bf16.mxu0 %v1077
            %1364 = vmatmul.mubr.bf16.gmra.mrb[0].mxu0 %v1076
            %v1365 = vpop.f32.mrb[0].mxu0
            %v1366 = vadd.f32 0.0, %v1365
            %v1367 = vpop.f32.mrb[0].mxu0
            %v1368 = vpop.f32.mrb[0].mxu0
            %v1369 = vadd.f32 0.0, %v1368
            %v1370 = vpop.f32.mrb[0].mxu0
            %1371 = vmatprep.mubr.bf16.mxu0 %v1080
            %1372 = vmatmul.mubr.bf16.gmra.mrb[0].mxu0 %v1079
            %v1373 = vpop.f32.mrb[0].mxu0
            %v1374 = vadd.f32 0.0, %v1373
            %v1375 = vpop.f32.mrb[0].mxu0
            %v1376 = vpop.f32.mrb[0].mxu0
            %v1377 = vadd.f32 0.0, %v1376
            %v1378 = vpop.f32.mrb[0].mxu0
            %1379 = vmatprep.mubr.bf16.mxu0 %v1083
            %1380 = vmatmul.mubr.bf16.gmra.mrb[0].mxu0 %v1082
            %v1381 = vpop.f32.mrb[0].mxu0
            %v1382 = vadd.f32 0.0, %v1381
            %v1383 = vpop.f32.mrb[0].mxu0
            %v1384 = vpop.f32.mrb[0].mxu0
            %v1385 = vadd.f32 0.0, %v1384
            %v1386 = vpop.f32.mrb[0].mxu0
            %1387 = vmatprep.mubr.bf16.mxu0 %v1086
            %1388 = vmatmul.mubr.bf16.gmra.mrb[0].mxu0 %v1085
            %v1389 = vpop.f32.mrb[0].mxu0
            %v1390 = vadd.f32 0.0, %v1389
            %v1391 = vpop.f32.mrb[0].mxu0
            %v1392 = vpop.f32.mrb[0].mxu0
            %v1393 = vadd.f32 0.0, %v1392
            %v1394 = vpop.f32.mrb[0].mxu0
            %1395 = vmatprep.mubr.bf16.mxu0 %v1089
            %1396 = vmatmul.mubr.bf16.gmra.mrb[0].mxu0 %v1088
            %v1397 = vpop.f32.mrb[0].mxu0
            %v1398 = vadd.f32 0.0, %v1397
            %v1399 = vpop.f32.mrb[0].mxu0
            %v1400 = vpop.f32.mrb[0].mxu0
            %v1401 = vadd.f32 0.0, %v1400
            %v1402 = vpop.f32.mrb[0].mxu0
            %1403 = vmatprep.mubr.bf16.mxu0 %v1092
            %1404 = vmatmul.mubr.bf16.gmra.mrb[0].mxu0 %v1091
            %v1405 = vpop.f32.mrb[0].mxu0
            %v1406 = vadd.f32 0.0, %v1405
            %v1407 = vpop.f32.mrb[0].mxu0
            %v1408 = vpop.f32.mrb[0].mxu0
            %v1409 = vadd.f32 0.0, %v1408
            %v1410 = vpop.f32.mrb[0].mxu0
            %1411 = vmatprep.mubr.bf16.mxu0 %v1095
            %1412 = vmatmul.mubr.bf16.gmra.mrb[0].mxu0 %v1094
            %v1413 = vpop.f32.mrb[0].mxu0
            %v1414 = vadd.f32 0.0, %v1413
            %v1415 = vpop.f32.mrb[0].mxu0
            %v1416 = vpop.f32.mrb[0].mxu0
            %v1417 = vadd.f32 0.0, %v1416
            %v1418 = vpop.f32.mrb[0].mxu0
            %1419 = vmatprep.mubr.bf16.mxu0 %v1098
            %1420 = vmatmul.mubr.bf16.gmra.mrb[0].mxu0 %v1097
            %v1421 = vpop.f32.mrb[0].mxu0
            %v1422 = vadd.f32 0.0, %v1421
            %v1423 = vpop.f32.mrb[0].mxu0
            %v1424 = vpop.f32.mrb[0].mxu0
            %v1425 = vadd.f32 0.0, %v1424
            %v1426 = vpop.f32.mrb[0].mxu0
            %1427 = vmatprep.mubr.bf16.mxu0 %v1101
            %1428 = vmatmul.mubr.bf16.gmra.mrb[0].mxu0 %v1100
            %v1429 = vpop.f32.mrb[0].mxu0
            %v1430 = vadd.f32 0.0, %v1429
            %v1431 = vpop.f32.mrb[0].mxu0
            %v1432 = vpop.f32.mrb[0].mxu0
            %v1433 = vadd.f32 0.0, %v1432
            %v1434 = vpop.f32.mrb[0].mxu0
            %1435 = vmatprep.mubr.bf16.mxu0 %v1104
            %1436 = vmatmul.mubr.bf16.gmra.mrb[0].mxu0 %v1103
            %v1437 = vpop.f32.mrb[0].mxu0
            %v1438 = vadd.f32 0.0, %v1437
            %v1439 = vpop.f32.mrb[0].mxu0
            %v1440 = vpop.f32.mrb[0].mxu0
            %v1441 = vadd.f32 0.0, %v1440
            %v1442 = vpop.f32.mrb[0].mxu0
            %1443 = vmatprep.mubr.bf16.mxu0 %v1107
            %1444 = vmatmul.mubr.bf16.gmra.mrb[0].mxu0 %v1106
            %v1445 = vpop.f32.mrb[0].mxu0
            %v1446 = vadd.f32 0.0, %v1445
            %v1447 = vpop.f32.mrb[0].mxu0
            %v1448 = vpop.f32.mrb[0].mxu0
            %v1449 = vadd.f32 0.0, %v1448
            %v1450 = vpop.f32.mrb[0].mxu0
            %1451 = vmatprep.mubr.bf16.mxu0 %v1110
            %1452 = vmatmul.mubr.bf16.gmra.mrb[0].mxu0 %v1109
            %v1453 = vpop.f32.mrb[0].mxu0
            %v1454 = vadd.f32 0.0, %v1453
            %v1455 = vpop.f32.mrb[0].mxu0
            %v1456 = vpop.f32.mrb[0].mxu0
            %v1457 = vadd.f32 0.0, %v1456
            %v1458 = vpop.f32.mrb[0].mxu0
            %1459 = vmatprep.mubr.bf16.mxu0 %v1113
            %1460 = vmatmul.mubr.bf16.gmra.mrb[0].mxu0 %v1112
            %v1461 = vpop.f32.mrb[0].mxu0
            %v1462 = vadd.f32 0.0, %v1461
            %v1463 = vpop.f32.mrb[0].mxu0
            %v1464 = vpop.f32.mrb[0].mxu0
            %v1465 = vadd.f32 0.0, %v1464
            %v1466 = vpop.f32.mrb[0].mxu0
            %1467 = vdwg.mxu0
            %1468 = vmatprep.subr.bf16.mxu0 0
            %1469 = vmatpush1.bf16.msra.mxu0 %v1275
            %1470 = vmatprep.subr.bf16.mxu0 0
            %1471 = vmatpush1.bf16.msra.mxu0 %v1276
            %1472 = vmatprep.subr.bf16.mxu0 0
            %1473 = vmatpush1.bf16.msra.mxu0 %v1277
            %1474 = vmatprep.subr.bf16.mxu0 0
            %1475 = vmatpush1.bf16.msra.mxu0 %v1278
            %1476 = vmatprep.subr.bf16.mxu0 0
            %1477 = vmatpush1.bf16.msra.mxu0 %v1279
            %1478 = vmatprep.subr.bf16.mxu0 0
            %1479 = vmatpush1.bf16.msra.mxu0 %v1280
            %1480 = vmatprep.subr.bf16.mxu0 0
            %1481 = vmatpush1.bf16.msra.mxu0 %v1281
            %1482 = vmatprep.subr.bf16.mxu0 0
            %1483 = vmatpush1.bf16.msra.mxu0 %v1282
            %1484 = vmatprep.subr.bf16.mxu0 0
            %1485 = vmatpush1.bf16.msra.mxu0 0
            %1486 = vmatprep.subr.bf16.mxu0 0
            %1487 = vmatpush1.bf16.msra.mxu0 0
            %1488 = vmatprep.subr.bf16.mxu0 0
            %1489 = vmatpush1.bf16.msra.mxu0 0
            %1490 = vmatprep.subr.bf16.mxu0 0
            %1491 = vmatpush1.bf16.msra.mxu0 0
            %1492 = vmatprep.subr.bf16.mxu0 0
            %1493 = vmatpush1.bf16.msra.mxu0 0
            %1494 = vmatprep.subr.bf16.mxu0 0
            %1495 = vmatpush1.bf16.msra.mxu0 0
            %1496 = vmatprep.subr.bf16.mxu0 0
            %1497 = vmatpush1.bf16.msra.mxu0 0
            %1498 = vmatprep.subr.bf16.mxu0 0
            %1499 = vmatpush1.bf16.msra.mxu0 0
            %1500 = vmatprep.mubr.bf16.mxu0 0
            %1501 = vmatmul.mubr.bf16.gmra.mrb[0].mxu0 %v1069
            %v1502 = vpop.f32.mrb[0].mxu0
            %v1503 = vadd.f32 %v1342, %v1502
            %v1504 = vpop.f32.mrb[0].mxu0
            %v1505 = vpop.f32.mrb[0].mxu0
            %v1506 = vadd.f32 %v1345, %v1505
            %v1507 = vpop.f32.mrb[0].mxu0
            %1508 = vmatprep.mubr.bf16.mxu0 0
            %1509 = vmatmul.mubr.bf16.gmra.mrb[0].mxu0 %v1072
            %v1510 = vpop.f32.mrb[0].mxu0
            %v1511 = vadd.f32 %v1350, %v1510
            %v1512 = vpop.f32.mrb[0].mxu0
            %v1513 = vpop.f32.mrb[0].mxu0
            %v1514 = vadd.f32 %v1353, %v1513
            %v1515 = vpop.f32.mrb[0].mxu0
            %1516 = vmatprep.mubr.bf16.mxu0 0
            %1517 = vmatmul.mubr.bf16.gmra.mrb[0].mxu0 %v1075
            %v1518 = vpop.f32.mrb[0].mxu0
            %v1519 = vadd.f32 %v1358, %v1518
            %v1520 = vpop.f32.mrb[0].mxu0
            %v1521 = vpop.f32.mrb[0].mxu0
            %v1522 = vadd.f32 %v1361, %v1521
            %v1523 = vpop.f32.mrb[0].mxu0
            %1524 = vmatprep.mubr.bf16.mxu0 0
            %1525 = vmatmul.mubr.bf16.gmra.mrb[0].mxu0 %v1078
            %v1526 = vpop.f32.mrb[0].mxu0
            %v1527 = vadd.f32 %v1366, %v1526
            %v1528 = vpop.f32.mrb[0].mxu0
            %v1529 = vpop.f32.mrb[0].mxu0
            %v1530 = vadd.f32 %v1369, %v1529
            %v1531 = vpop.f32.mrb[0].mxu0
            %1532 = vmatprep.mubr.bf16.mxu0 0
            %1533 = vmatmul.mubr.bf16.gmra.mrb[0].mxu0 %v1081
            %v1534 = vpop.f32.mrb[0].mxu0
            %v1535 = vadd.f32 %v1374, %v1534
            %v1536 = vpop.f32.mrb[0].mxu0
            %v1537 = vpop.f32.mrb[0].mxu0
            %v1538 = vadd.f32 %v1377, %v1537
            %v1539 = vpop.f32.mrb[0].mxu0
            %1540 = vmatprep.mubr.bf16.mxu0 0
            %1541 = vmatmul.mubr.bf16.gmra.mrb[0].mxu0 %v1084
            %v1542 = vpop.f32.mrb[0].mxu0
            %v1543 = vadd.f32 %v1382, %v1542
            %v1544 = vpop.f32.mrb[0].mxu0
            %v1545 = vpop.f32.mrb[0].mxu0
            %v1546 = vadd.f32 %v1385, %v1545
            %v1547 = vpop.f32.mrb[0].mxu0
            %1548 = vmatprep.mubr.bf16.mxu0 0
            %1549 = vmatmul.mubr.bf16.gmra.mrb[0].mxu0 %v1087
            %v1550 = vpop.f32.mrb[0].mxu0
            %v1551 = vadd.f32 %v1390, %v1550
            %v1552 = vpop.f32.mrb[0].mxu0
            %v1553 = vpop.f32.mrb[0].mxu0
            %v1554 = vadd.f32 %v1393, %v1553
            %v1555 = vpop.f32.mrb[0].mxu0
            %1556 = vmatprep.mubr.bf16.mxu0 0
            %1557 = vmatmul.mubr.bf16.gmra.mrb[0].mxu0 %v1090
            %v1558 = vpop.f32.mrb[0].mxu0
            %v1559 = vadd.f32 %v1398, %v1558
            %v1560 = vpop.f32.mrb[0].mxu0
            %v1561 = vpop.f32.mrb[0].mxu0
            %v1562 = vadd.f32 %v1401, %v1561
            %v1563 = vpop.f32.mrb[0].mxu0
            %1564 = vmatprep.mubr.bf16.mxu0 0
            %1565 = vmatmul.mubr.bf16.gmra.mrb[0].mxu0 %v1093
            %v1566 = vpop.f32.mrb[0].mxu0
            %v1567 = vadd.f32 %v1406, %v1566
            %v1568 = vpop.f32.mrb[0].mxu0
            %v1569 = vpop.f32.mrb[0].mxu0
            %v1570 = vadd.f32 %v1409, %v1569
            %v1571 = vpop.f32.mrb[0].mxu0
            %1572 = vmatprep.mubr.bf16.mxu0 0
            %1573 = vmatmul.mubr.bf16.gmra.mrb[0].mxu0 %v1096
            %v1574 = vpop.f32.mrb[0].mxu0
            %v1575 = vadd.f32 %v1414, %v1574
            %v1576 = vpop.f32.mrb[0].mxu0
            %v1577 = vpop.f32.mrb[0].mxu0
            %v1578 = vadd.f32 %v1417, %v1577
            %v1579 = vpop.f32.mrb[0].mxu0
            %1580 = vmatprep.mubr.bf16.mxu0 0
            %1581 = vmatmul.mubr.bf16.gmra.mrb[0].mxu0 %v1099
            %v1582 = vpop.f32.mrb[0].mxu0
            %v1583 = vadd.f32 %v1422, %v1582
            %v1584 = vpop.f32.mrb[0].mxu0
            %v1585 = vpop.f32.mrb[0].mxu0
            %v1586 = vadd.f32 %v1425, %v1585
            %v1587 = vpop.f32.mrb[0].mxu0
            %1588 = vmatprep.mubr.bf16.mxu0 0
            %1589 = vmatmul.mubr.bf16.gmra.mrb[0].mxu0 %v1102
            %v1590 = vpop.f32.mrb[0].mxu0
            %v1591 = vadd.f32 %v1430, %v1590
            %v1592 = vpop.f32.mrb[0].mxu0
            %v1593 = vpop.f32.mrb[0].mxu0
            %v1594 = vadd.f32 %v1433, %v1593
            %v1595 = vpop.f32.mrb[0].mxu0
            %1596 = vmatprep.mubr.bf16.mxu0 0
            %1597 = vmatmul.mubr.bf16.gmra.mrb[0].mxu0 %v1105
            %v1598 = vpop.f32.mrb[0].mxu0
            %v1599 = vadd.f32 %v1438, %v1598
            %v1600 = vpop.f32.mrb[0].mxu0
            %v1601 = vpop.f32.mrb[0].mxu0
            %v1602 = vadd.f32 %v1441, %v1601
            %v1603 = vpop.f32.mrb[0].mxu0
            %1604 = vmatprep.mubr.bf16.mxu0 0
            %1605 = vmatmul.mubr.bf16.gmra.mrb[0].mxu0 %v1108
            %v1606 = vpop.f32.mrb[0].mxu0
            %v1607 = vadd.f32 %v1446, %v1606
            %v1608 = vpop.f32.mrb[0].mxu0
            %v1609 = vpop.f32.mrb[0].mxu0
            %v1610 = vadd.f32 %v1449, %v1609
            %v1611 = vpop.f32.mrb[0].mxu0
            %1612 = vmatprep.mubr.bf16.mxu0 0
            %1613 = vmatmul.mubr.bf16.gmra.mrb[0].mxu0 %v1111
            %v1614 = vpop.f32.mrb[0].mxu0
            %v1615 = vadd.f32 %v1454, %v1614
            %v1616 = vpop.f32.mrb[0].mxu0
            %v1617 = vpop.f32.mrb[0].mxu0
            %v1618 = vadd.f32 %v1457, %v1617
            %v1619 = vpop.f32.mrb[0].mxu0
            %1620 = vmatprep.mubr.bf16.mxu0 0
            %1621 = vmatmul.mubr.bf16.gmra.mrb[0].mxu0 %v1114
            %v1622 = vpop.f32.mrb[0].mxu0
            %v1623 = vadd.f32 %v1462, %v1622
            %v1624 = vpop.f32.mrb[0].mxu0
            %v1625 = vpop.f32.mrb[0].mxu0
            %v1626 = vadd.f32 %v1465, %v1625
            %v1627 = vpop.f32.mrb[0].mxu0
            %1628 = vdwg.mxu0
            %v1629 = vpack.c.bf16 %v1506, %v1503
            %v1630 = vpack.c.bf16 %v1514, %v1511
            %v1631 = vpack.c.bf16 %v1522, %v1519
            %v1632 = vpack.c.bf16 %v1530, %v1527
            %v1633 = vpack.c.bf16 %v1538, %v1535
            %v1634 = vpack.c.bf16 %v1546, %v1543
            %v1635 = vpack.c.bf16 %v1554, %v1551
            %v1636 = vpack.c.bf16 %v1562, %v1559
            %v1637 = vpack.c.bf16 %v1570, %v1567
            %v1638 = vpack.c.bf16 %v1578, %v1575
            %v1639 = vpack.c.bf16 %v1586, %v1583
            %v1640 = vpack.c.bf16 %v1594, %v1591
            %v1641 = vpack.c.bf16 %v1602, %v1599
            %v1642 = vpack.c.bf16 %v1610, %v1607
            %v1643 = vpack.c.bf16 %v1618, %v1615
            %v1644 = vpack.c.bf16 %v1626, %v1623
            %1645 = vst [vmem:[#allocation3] sm:$0xff] %v1629
            %1646 = vst [vmem:[#allocation3 + $0x8] sm:$0xff] %v1630
            %1647 = vst [vmem:[#allocation3 + $0x10] sm:$0xff] %v1631
            %1648 = vst [vmem:[#allocation3 + $0x18] sm:$0xff] %v1632
            %1649 = vst [vmem:[#allocation3 + $0x20] sm:$0xff] %v1633
            %1650 = vst [vmem:[#allocation3 + $0x28] sm:$0xff] %v1634
            %1651 = vst [vmem:[#allocation3 + $0x30] sm:$0xff] %v1635
            %1652 = vst [vmem:[#allocation3 + $0x38] sm:$0xff] %v1636
            %1653 = vst [vmem:[#allocation3 + $0x40] sm:$0xff] %v1637
            %1654 = vst [vmem:[#allocation3 + $0x48] sm:$0xff] %v1638
            %1655 = vst [vmem:[#allocation3 + $0x50] sm:$0xff] %v1639
            %1656 = vst [vmem:[#allocation3 + $0x58] sm:$0xff] %v1640
            %1657 = vst [vmem:[#allocation3 + $0x60] sm:$0xff] %v1641
            %1658 = vst [vmem:[#allocation3 + $0x68] sm:$0xff] %v1642
            %1659 = vst [vmem:[#allocation3 + $0x70] sm:$0xff] %v1643
            %1660 = vst [vmem:[#allocation3 + $0x78] sm:$0xff] %v1644
          $region68: #{tpu_custom_call.1} parent=55 // pred_fallthru
            _
        $region56: #{tpu_custom_call.1} parent=35 // pred_fallthru
          _
        // Predicated region
        $region69: #{tpu_custom_call.1} parent=35 // pred_check
          _
        $region70: #{tpu_custom_call.1} parent=35 // pred_check_branch
          %1662 = sbr.rel (%p276) target = $region72
        $region71: #{tpu_custom_call.1} parent=35 // pred_region
          %s1663 = smul.u32 4, 32
          %s1664 = smul.u32 %s1663, 2
          %s1665 = sshll.u32 %s1664, 4
          %1666 = dma.done [#allocation5], %s1665
        $region72: #{tpu_custom_call.1} parent=35 // pred_fallthru
          _
        %s1667 = smul.u32 %s28, 128
        %s1668 = sshra.s32 %s1667, 4
        %s1669 = sand.u32 %s1667, 15
        %s1670 = smul.u32 %s1668, 2
        %s1671 = smul.addr %s1670, 8
        %s1672 = scalar_lea.vmem [#allocation4], %s1671
        %v1673 = vld [vmem:[%s1672] sm:$0xff]
        %v1674 = vld [vmem:[%s1672 + $0x8] sm:$0xff]
        %v1675 = vld [vmem:[%s1672 + $0x10] sm:$0xff]
        %v1676 = vld [vmem:[%s1672 + $0x18] sm:$0xff]
        %v1677 = vld [vmem:[%s1672 + $0x20] sm:$0xff]
        %v1678 = vld [vmem:[%s1672 + $0x28] sm:$0xff]
        %v1679 = vld [vmem:[%s1672 + $0x30] sm:$0xff]
        %v1680 = vld [vmem:[%s1672 + $0x38] sm:$0xff]
        %v1681 = vld [vmem:[%s1672 + $0x40] sm:$0xff]
        %v1682 = vld [vmem:[%s1672 + $0x48] sm:$0xff]
        %v1683 = vld [vmem:[%s1672 + $0x50] sm:$0xff]
        %v1684 = vld [vmem:[%s1672 + $0x58] sm:$0xff]
        %v1685 = vld [vmem:[%s1672 + $0x60] sm:$0xff]
        %v1686 = vld [vmem:[%s1672 + $0x68] sm:$0xff]
        %v1687 = vld [vmem:[%s1672 + $0x70] sm:$0xff]
        %v1688 = vld [vmem:[%s1672 + $0x78] sm:$0xff]
        %v1689 = vld [vmem:[#allocation3] sm:$0xff]
        %v1690 = vld [vmem:[#allocation3 + $0x8] sm:$0xff]
        %v1691 = vld [vmem:[#allocation3 + $0x10] sm:$0xff]
        %v1692 = vld [vmem:[#allocation3 + $0x18] sm:$0xff]
        %v1693 = vld [vmem:[#allocation3 + $0x20] sm:$0xff]
        %v1694 = vld [vmem:[#allocation3 + $0x28] sm:$0xff]
        %v1695 = vld [vmem:[#allocation3 + $0x30] sm:$0xff]
        %v1696 = vld [vmem:[#allocation3 + $0x38] sm:$0xff]
        %v1697 = vld [vmem:[#allocation3 + $0x40] sm:$0xff]
        %v1698 = vld [vmem:[#allocation3 + $0x48] sm:$0xff]
        %v1699 = vld [vmem:[#allocation3 + $0x50] sm:$0xff]
        %v1700 = vld [vmem:[#allocation3 + $0x58] sm:$0xff]
        %v1701 = vld [vmem:[#allocation3 + $0x60] sm:$0xff]
        %v1702 = vld [vmem:[#allocation3 + $0x68] sm:$0xff]
        %v1703 = vld [vmem:[#allocation3 + $0x70] sm:$0xff]
        %v1704 = vld [vmem:[#allocation3 + $0x78] sm:$0xff]
        %v1705 = vld [vmem:[%s271] sm:$0x1]
        %v1707 = vlaneseq
        %v1708 = vshrl.u32 %v1707, 7
        %v1709 = vsub.s32 0, %v1708
        %v1710 = vrot.slane %v1705, %v1709
        %1712 = vmatprep.subr.bf16.mxu0 0
        %1713 = vmatpush1.bf16.msra.mxu0 %v1689
        %1714 = vmatprep.subr.bf16.mxu0 0
        %1715 = vmatpush1.bf16.msra.mxu0 %v1690
        %1716 = vmatprep.subr.bf16.mxu0 0
        %1717 = vmatpush1.bf16.msra.mxu0 %v1691
        %1718 = vmatprep.subr.bf16.mxu0 0
        %1719 = vmatpush1.bf16.msra.mxu0 %v1692
        %1720 = vmatprep.subr.bf16.mxu0 0
        %1721 = vmatpush1.bf16.msra.mxu0 %v1693
        %1722 = vmatprep.subr.bf16.mxu0 0
        %1723 = vmatpush1.bf16.msra.mxu0 %v1694
        %1724 = vmatprep.subr.bf16.mxu0 0
        %1725 = vmatpush1.bf16.msra.mxu0 %v1695
        %1726 = vmatprep.subr.bf16.mxu0 0
        %1727 = vmatpush1.bf16.msra.mxu0 %v1696
        %1728 = vmatprep.subr.bf16.mxu0 0
        %1729 = vmatpush1.bf16.msra.mxu0 %v1697
        %1730 = vmatprep.subr.bf16.mxu0 0
        %1731 = vmatpush1.bf16.msra.mxu0 %v1698
        %1732 = vmatprep.subr.bf16.mxu0 0
        %1733 = vmatpush1.bf16.msra.mxu0 %v1699
        %1734 = vmatprep.subr.bf16.mxu0 0
        %1735 = vmatpush1.bf16.msra.mxu0 %v1700
        %1736 = vmatprep.subr.bf16.mxu0 0
        %1737 = vmatpush1.bf16.msra.mxu0 %v1701
        %1738 = vmatprep.subr.bf16.mxu0 0
        %1739 = vmatpush1.bf16.msra.mxu0 %v1702
        %1740 = vmatprep.subr.bf16.mxu0 0
        %1741 = vmatpush1.bf16.msra.mxu0 %v1703
        %1742 = vmatprep.subr.bf16.mxu0 0
        %1743 = vmatpush1.bf16.msra.mxu0 %v1704
        %1744 = vmatprep.mubr.bf16.mxu0 %v1674
        %1745 = vmatmul.mubr.bf16.gmra.mrb[0].mxu0 %v1673
        %v1746 = vpop.f32.mrb[0].mxu0
        %v1747 = vadd.f32 %v1710, %v1746
        %v1748 = vpop.f32.mrb[0].mxu0
        %v1749 = vpop.f32.mrb[0].mxu0
        %v1750 = vadd.f32 %v1710, %v1749
        %v1751 = vpop.f32.mrb[0].mxu0
        %1752 = vmatprep.mubr.bf16.mxu0 %v1676
        %1753 = vmatmul.mubr.bf16.gmra.mrb[0].mxu0 %v1675
        %v1754 = vpop.f32.mrb[0].mxu0
        %v1755 = vadd.f32 %v1710, %v1754
        %v1756 = vpop.f32.mrb[0].mxu0
        %v1757 = vpop.f32.mrb[0].mxu0
        %v1758 = vadd.f32 %v1710, %v1757
        %v1759 = vpop.f32.mrb[0].mxu0
        %1760 = vmatprep.mubr.bf16.mxu0 %v1678
        %1761 = vmatmul.mubr.bf16.gmra.mrb[0].mxu0 %v1677
        %v1762 = vpop.f32.mrb[0].mxu0
        %v1763 = vadd.f32 %v1710, %v1762
        %v1764 = vpop.f32.mrb[0].mxu0
        %v1765 = vpop.f32.mrb[0].mxu0
        %v1766 = vadd.f32 %v1710, %v1765
        %v1767 = vpop.f32.mrb[0].mxu0
        %1768 = vmatprep.mubr.bf16.mxu0 %v1680
        %1769 = vmatmul.mubr.bf16.gmra.mrb[0].mxu0 %v1679
        %v1770 = vpop.f32.mrb[0].mxu0
        %v1771 = vadd.f32 %v1710, %v1770
        %v1772 = vpop.f32.mrb[0].mxu0
        %v1773 = vpop.f32.mrb[0].mxu0
        %v1774 = vadd.f32 %v1710, %v1773
        %v1775 = vpop.f32.mrb[0].mxu0
        %1776 = vmatprep.mubr.bf16.mxu0 %v1682
        %1777 = vmatmul.mubr.bf16.gmra.mrb[0].mxu0 %v1681
        %v1778 = vpop.f32.mrb[0].mxu0
        %v1779 = vadd.f32 %v1710, %v1778
        %v1780 = vpop.f32.mrb[0].mxu0
        %v1781 = vpop.f32.mrb[0].mxu0
        %v1782 = vadd.f32 %v1710, %v1781
        %v1783 = vpop.f32.mrb[0].mxu0
        %1784 = vmatprep.mubr.bf16.mxu0 %v1684
        %1785 = vmatmul.mubr.bf16.gmra.mrb[0].mxu0 %v1683
        %v1786 = vpop.f32.mrb[0].mxu0
        %v1787 = vadd.f32 %v1710, %v1786
        %v1788 = vpop.f32.mrb[0].mxu0
        %v1789 = vpop.f32.mrb[0].mxu0
        %v1790 = vadd.f32 %v1710, %v1789
        %v1791 = vpop.f32.mrb[0].mxu0
        %1792 = vmatprep.mubr.bf16.mxu0 %v1686
        %1793 = vmatmul.mubr.bf16.gmra.mrb[0].mxu0 %v1685
        %v1794 = vpop.f32.mrb[0].mxu0
        %v1795 = vadd.f32 %v1710, %v1794
        %v1796 = vpop.f32.mrb[0].mxu0
        %v1797 = vpop.f32.mrb[0].mxu0
        %v1798 = vadd.f32 %v1710, %v1797
        %v1799 = vpop.f32.mrb[0].mxu0
        %1800 = vmatprep.mubr.bf16.mxu0 %v1688
        %1801 = vmatmul.mubr.bf16.gmra.mrb[0].mxu0 %v1687
        %v1802 = vpop.f32.mrb[0].mxu0
        %v1803 = vadd.f32 %v1710, %v1802
        %v1804 = vpop.f32.mrb[0].mxu0
        %v1805 = vpop.f32.mrb[0].mxu0
        %v1806 = vadd.f32 %v1710, %v1805
        %v1807 = vpop.f32.mrb[0].mxu0
        %1808 = vdwg.mxu0
        %v1809 = vmax.f32 %v1747, 0.0
        %v1810 = vmax.f32 %v1750, 0.0
        %v1811 = vmax.f32 %v1755, 0.0
        %v1812 = vmax.f32 %v1758, 0.0
        %v1813 = vmax.f32 %v1763, 0.0
        %v1814 = vmax.f32 %v1766, 0.0
        %v1815 = vmax.f32 %v1771, 0.0
        %v1816 = vmax.f32 %v1774, 0.0
        %v1817 = vmax.f32 %v1779, 0.0
        %v1818 = vmax.f32 %v1782, 0.0
        %v1819 = vmax.f32 %v1787, 0.0
        %v1820 = vmax.f32 %v1790, 0.0
        %v1821 = vmax.f32 %v1795, 0.0
        %v1822 = vmax.f32 %v1798, 0.0
        %v1823 = vmax.f32 %v1803, 0.0
        %v1824 = vmax.f32 %v1806, 0.0
        // Predicated region
        $region73: #{tpu_custom_call.1} parent=35 // pred_check
          %p1825 = pneg %p274
        $region74: #{tpu_custom_call.1} parent=35 // pred_check_branch
          %1827 = sbr.rel (%p1825) target = $region76
        $region75: #{tpu_custom_call.1} parent=35 // pred_region
          %v1828 = vpack.c.bf16 %v1810, %v1809
          %v1829 = vpack.c.bf16 %v1812, %v1811
          %v1830 = vpack.c.bf16 %v1814, %v1813
          %v1831 = vpack.c.bf16 %v1816, %v1815
          %v1832 = vpack.c.bf16 %v1818, %v1817
          %v1833 = vpack.c.bf16 %v1820, %v1819
          %v1834 = vpack.c.bf16 %v1822, %v1821
          %v1835 = vpack.c.bf16 %v1824, %v1823
          %s1836 = smul.u32 %s1668, 3
          %s1837 = smul.addr %s1836, 8
          %s1838 = scalar_lea.vmem [#allocation2], %s1837
          %1839 = vst [vmem:[%s1838 + $0x8] sm:$0xff] %v1828
          %1840 = vst [vmem:[%s1838 + $0x20] sm:$0xff] %v1829
          %1841 = vst [vmem:[%s1838 + $0x38] sm:$0xff] %v1830
          %1842 = vst [vmem:[%s1838 + $0x50] sm:$0xff] %v1831
          %1843 = vst [vmem:[%s1838 + $0x68] sm:$0xff] %v1832
          %1844 = vst [vmem:[%s1838 + $0x80] sm:$0xff] %v1833
          %1845 = vst [vmem:[%s1838 + $0x98] sm:$0xff] %v1834
          %1846 = vst [vmem:[%s1838 + $0xb0] sm:$0xff] %v1835
        $region76: #{tpu_custom_call.1} parent=35 // pred_fallthru
          _
        %p1847 = scmp.eq.s32.totalorder %s27, 1
        // Predicated region
        $region77: #{tpu_custom_call.1} parent=35 // pred_check
          %p1848 = pneg %p1847
        $region78: #{tpu_custom_call.1} parent=35 // pred_check_branch
          %1850 = sbr.rel (%p1848) target = $region80
        $region79: #{tpu_custom_call.1} parent=35 // pred_region
          %v1851 = vpack.c.bf16 %v1810, %v1809
          %v1852 = vpack.c.bf16 %v1812, %v1811
          %v1853 = vpack.c.bf16 %v1814, %v1813
          %v1854 = vpack.c.bf16 %v1816, %v1815
          %v1855 = vpack.c.bf16 %v1818, %v1817
          %v1856 = vpack.c.bf16 %v1820, %v1819
          %v1857 = vpack.c.bf16 %v1822, %v1821
          %v1858 = vpack.c.bf16 %v1824, %v1823
          %s1859 = smul.u32 %s1668, 3
          %s1860 = smul.addr %s1859, 8
          %s1861 = scalar_lea.vmem [#allocation2], %s1860
          %1862 = vst [vmem:[%s1861 + $0x10] sm:$0xff] %v1851
          %1863 = vst [vmem:[%s1861 + $0x28] sm:$0xff] %v1852
          %1864 = vst [vmem:[%s1861 + $0x40] sm:$0xff] %v1853
          %1865 = vst [vmem:[%s1861 + $0x58] sm:$0xff] %v1854
          %1866 = vst [vmem:[%s1861 + $0x70] sm:$0xff] %v1855
          %1867 = vst [vmem:[%s1861 + $0x88] sm:$0xff] %v1856
          %1868 = vst [vmem:[%s1861 + $0xa0] sm:$0xff] %v1857
          %1869 = vst [vmem:[%s1861 + $0xb8] sm:$0xff] %v1858
        $region80: #{tpu_custom_call.1} parent=35 // pred_fallthru
          _
        %1870 = vst [vmem:[%s268] sm:$0xff] %v1809
        %1871 = vst [vmem:[%s268 + $0x8] sm:$0xff] %v1810
        %1872 = vst [vmem:[%s268 + $0x10] sm:$0xff] %v1811
        %1873 = vst [vmem:[%s268 + $0x18] sm:$0xff] %v1812
        %1874 = vst [vmem:[%s268 + $0x20] sm:$0xff] %v1813
        %1875 = vst [vmem:[%s268 + $0x28] sm:$0xff] %v1814
        %1876 = vst [vmem:[%s268 + $0x30] sm:$0xff] %v1815
        %1877 = vst [vmem:[%s268 + $0x38] sm:$0xff] %v1816
        %1878 = vst [vmem:[%s268 + $0x40] sm:$0xff] %v1817
        %1879 = vst [vmem:[%s268 + $0x48] sm:$0xff] %v1818
        %1880 = vst [vmem:[%s268 + $0x50] sm:$0xff] %v1819
        %1881 = vst [vmem:[%s268 + $0x58] sm:$0xff] %v1820
        %1882 = vst [vmem:[%s268 + $0x60] sm:$0xff] %v1821
        %1883 = vst [vmem:[%s268 + $0x68] sm:$0xff] %v1822
        %1884 = vst [vmem:[%s268 + $0x70] sm:$0xff] %v1823
        %1885 = vst [vmem:[%s268 + $0x78] sm:$0xff] %v1824
        %s1886 = sand.u32 %s137, 1
        %s1887 = scalar_lea.sflag [#allocation8], %s1886
        %s1888 = sand.u32 %s137, 1
        %s1889 = smul.addr %s1888, 128
        %s1890 = scalar_lea.vmem [#allocation12], %s1889
        // Predicated region
        $region81: #{tpu_custom_call.1} parent=35 // pred_check
          %p1891 = pneg %p147
        $region82: #{tpu_custom_call.1} parent=35 // pred_check_branch
          %1893 = sbr.rel (%p1891) target = $region84
        $region83: #{tpu_custom_call.1} parent=35 // pred_region
          %s1894 = smul.u32 16, %s28
          %s1896 = ssub.s32 2048, 2048
          %1897 = vsyncadd %s1887, %s1896
          %s1898 = smul.addr %s1894, 128
          %s1899 = scalar_lea.hbm %s5, %s1898
          %s1900 = sshll.u32 %s1890, 4
          %s1901 = int_to_ptr.vmem [resolvable:$true] %s1900
          %1906 = dma.vmem_to_hbm [thread:$0]  %s1901, 2048, %s1899, %s1887, 128, 128, 8
        $region84: #{tpu_custom_call.1} parent=35 // pred_fallthru
          _
      $region36: #{tpu_custom_call.1} parent=5 // pred_fallthru
        _
      %p1907 = scmp.le.s32.totalorder 2, %s18
      // Predicated region
      $region85: #{tpu_custom_call.1} parent=5 // pred_check
        %p1908 = pneg %p1907
      $region86: #{tpu_custom_call.1} parent=5 // pred_check_branch
        %1910 = sbr.rel (%p1908) target = $region88
      $region87: #{tpu_custom_call.1} parent=5 // pred_region
        %s1911 = ssub.s32 %s18, 2
        // Predicated region
        $region89: #{tpu_custom_call.1} parent=87 // pred_check
          %p1912 = pneg %p153
        $region90: #{tpu_custom_call.1} parent=87 // pred_check_branch
          %1914 = sbr.rel (%p1912) target = $region92
        $region91: #{tpu_custom_call.1} parent=87 // pred_region
          %s1915 = sand.u32 %s138, 1
          %s1916 = scalar_lea.sflag [#allocation8], %s1915
          %s1917 = sand.u32 %s138, 1
          %s1918 = smul.addr %s1917, 128
          %s1919 = scalar_lea.vmem [#allocation12], %s1918
          %1920 = dma.done %s1916, 2048
        $region92: #{tpu_custom_call.1} parent=87 // pred_fallthru
          _
      $region88: #{tpu_custom_call.1} parent=5 // pred_fallthru
        _
    $region6: #{tpu_custom_call.1} parent=1 // loop_footer
      %s22 = sadd.s32 1, %s18
    $region7: #{tpu_custom_call.1} parent=1 // loop_footer_branch
      %17 = sbr.rel target = $region3
    $region8: #{tpu_custom_call.1} parent=1 // loop_exit
      _
    %1921 = vsyncpa [#allocation7], 1
    %s1922 = scalar_lea.sflag [#allocation7], 1
    %1923 = vsyncpa %s1922, 1
    %1924 = vsyncpa [#allocation10], 1
    %s1925 = scalar_lea.sflag [#allocation10], 1
    %1926 = vsyncpa %s1925, 1
    %1927 = vsyncpa [#allocation8], 1
    %s1928 = scalar_lea.sflag [#allocation8], 1
    %1929 = vsyncpa %s1928, 1
  %1930 = vsyncmov [#allocation5]
  %s1931 = vpop.sfrf %1930
  %p1932 = scmp.eq.s32.totalorder %s1931, 0
  %p1933 = pneg %p1932
  %1935 = shalt.err (%p1933)

</llo_original>
